<compile_context>
chip_gen: v6e
topology: v6e:2x2x1
jax: 0.10.0
libtpu: 0.0.40
codegen_flags: <defaults>
</compile_context>

<pallas_src>
import math
import functools

import jax
import jax.numpy as jnp
from jax.experimental import pallas as pl
from jax.experimental.pallas import tpu as pltpu


# ----------------------------- Pallas kernel ------------------------------ #
def attnpool_kernel(x_ref, posx_ref, q_ref, scls_ref, vcls_ref,
                    wkv_ref, bkv_ref, hasn_ref, hexp_ref,
                    wo_ref, bo_ref, wc_ref, bc_ref,
                    out_ref, *, num_heads):
    TB, N, C = x_ref.shape
    H = num_heads
    Dout = wc_ref.shape[-1]

    # ---- spatial tokens: bf16 pos add, fused K/V projection (f32 accum) ----
    seq = (x_ref[...] + posx_ref[...]).reshape(TB * N, C)            # bf16
    kv = jnp.dot(seq, wkv_ref[...],
                 preferred_element_type=jnp.float32) + bkv_ref[...]  # (TB*N,2C)
    k_x = kv[:, :C].reshape(TB, N, C)
    v_x = kv[:, C:].reshape(TB, N, C)

    # ---- per-head scores via the 0/1 selector matmul (bf16 operands) -------
    # 1/sqrt(head_dim) is pre-folded into the cls query q_ref.
    qk = (k_x * q_ref[...].reshape(1, 1, C)).astype(jnp.bfloat16)    # (TB,N,C)
    s_x = jnp.dot(qk.reshape(TB * N, C), hasn_ref[...],
                  preferred_element_type=jnp.float32).reshape(TB, N, H)
    s_cls = scls_ref[...].reshape(1, 1, H)                           # precomputed

    # ---- softmax over S = {cls} U {N spatial keys}, kept in f32 ------------
    # TODO(synk): for large spatial N (49/196+) move the key axis into lanes
    # (scores shaped (TB*H, S)) so exp/max/sum run at full lane occupancy.
    m = jnp.maximum(jnp.max(s_x, axis=1, keepdims=True), s_cls)      # (TB,1,H)
    e_cls = jnp.exp(s_cls - m)                                       # (TB,1,H)
    e_x = jnp.exp(s_x - m)                                           # (TB,N,H)
    denom = e_cls + jnp.sum(e_x, axis=1, keepdims=True)              # (TB,1,H)
    inv = pl.reciprocal(denom, approx=True)                          # EUP slot
    p_cls = e_cls * inv                                              # (TB,1,H)
    p_x = e_x * inv                                                  # (TB,N,H)

    # ---- expand head probs back to channel layout, weighted value sum ------
    p_full_x = jnp.dot(p_x.reshape(TB * N, H).astype(jnp.bfloat16),
                       hexp_ref[...],
                       preferred_element_type=jnp.float32).reshape(TB, N, C)
    ctx = jnp.sum(p_full_x * v_x, axis=1)                            # (TB, C)
    p_cls_full = jnp.dot(p_cls.reshape(TB, H).astype(jnp.bfloat16),
                         hexp_ref[...],
                         preferred_element_type=jnp.float32)         # (TB, C)
    ctx = ctx + p_cls_full * vcls_ref[...]                           # (TB, C)

    # ---- output projections -------------------------------------------------
    out = jnp.dot(ctx.astype(jnp.bfloat16), wo_ref[...],
                  preferred_element_type=jnp.float32) + bo_ref[...]  # (TB, C)
    y = jnp.dot(out.astype(jnp.bfloat16), wc_ref[...],
                preferred_element_type=jnp.float32) + bc_ref[...]    # (TB, Dout)

    # head-averaged attention weights for the spatial keys (cls column is
    # dropped by the module anyway: att_map[:, :, 1:])
    att = jnp.mean(p_x, axis=2)                                      # (TB, N)

    # ---- lane-dense merged output: [ y | att | zero-pad ] -> one store -----
    pad = out_ref.shape[-1] - Dout - N
    pieces = [y, att]
    if pad > 0:
        pieces.append(jnp.zeros((TB, pad), jnp.float32))
    out_ref[...] = jnp.concatenate(pieces, axis=-1)


# ------------------------------- wrapper ----------------------------------- #
def _auto_batch_tile(B, N):
    """One fat grid step on single-TC chips; >=2 parallel steps on v7x-class."""
    try:
        kind = jax.devices()[0].device_kind.lower()
    except Exception:
        kind = ""
    two_tensorcores = ("v7" in kind) or ("tpu7" in kind)
    if two_tensorcores and B >= 16:
        # two parallel grid steps so both TensorCores get work; keep the
        # batch block sublane-aligned (multiple of 8).
        return pl.cdiv(pl.cdiv(B, 2), 8) * 8
    # single TensorCore (v5e/v6e) or tiny batch: one fat grid step
    # (per-step fixed overhead dominates at these sizes).
    return B


def attention_pool2d(x, params, num_heads, *, batch_tile=None):
    """x: (B, C, N) float32.  Returns (y, att_map) matching the torch module."""
    B, C, N = x.shape
    H = num_heads
    hd = C // H
    Dout = params["c_proj_b"].shape[0]
    OUT_LANES = max(128, pl.cdiv(Dout + N, 128) * 128)

    # ---- chip-aware batch tiling --------------------------------------------
    TB = _auto_batch_tile(B, N) if batch_tile is None else min(batch_tile, B)
    Bp = pl.cdiv(B, TB) * TB
    grid_steps = Bp // TB

    # ---- batch-dependent input: (B, C, N) -> (B, N, C), streamed in bf16 ----
    x_perm = jnp.transpose(x, (0, 2, 1)).astype(jnp.bfloat16)
    if Bp != B:
        x_perm = jnp.pad(x_perm, ((0, Bp - B), (0, 0), (0, 0)))

    pos = params["pos_emb"].astype(jnp.float32)                      # (1, S, C)
    pos_x = pos[0, 1:, :].astype(jnp.bfloat16)                       # (N, C)

    # ---- batch-independent cls row, hoisted out of the kernel (f32, exact) --
    # cls gets the positional embedding twice (matches the torch module).
    cls_row = params["cls_token"][0].astype(jnp.float32) + 2.0 * pos[0, :1, :]
    W = params["in_proj_w"].astype(jnp.float32)                      # (3C, C)
    b_in = params["in_proj_b"].astype(jnp.float32)                   # (3C,)
    scale = 1.0 / math.sqrt(hd)
    q_cls = (cls_row @ W[:C].T + b_in[:C]) * scale                   # (1, C) pre-scaled
    k_cls = cls_row @ W[C:2 * C].T + b_in[C:2 * C]                   # (1, C)
    v_cls = cls_row @ W[2 * C:].T + b_in[2 * C:]                     # (1, C)
    s_cls = jnp.sum((q_cls * k_cls).reshape(1, H, hd), axis=-1)      # (1, H)

    # ---- weights: only the K/V columns of in_proj go to the kernel ----------
    wkv_t = W[C:].T.astype(jnp.bfloat16)                             # (C, 2C)
    bkv = b_in[C:].reshape(1, 2 * C)                                 # (1, 2C) f32
    wo_t = params["out_proj_w"].T.astype(jnp.bfloat16)               # (C, C)
    bo = params["out_proj_b"].reshape(1, C).astype(jnp.float32)
    wc_t = params["c_proj_w"].T.astype(jnp.bfloat16)                 # (C, Dout)
    bc = params["c_proj_b"].reshape(1, Dout).astype(jnp.float32)

    # 0/1 head-assignment matrices (exact in bf16): channel c -> head c // hd
    head_of_c = jnp.arange(C, dtype=jnp.int32) // hd
    hasn = (head_of_c[:, None] == jnp.arange(H, dtype=jnp.int32)[None, :]
            ).astype(jnp.bfloat16)                                   # (C, H)
    hexp = hasn.T                                                    # (H, C)

    # Single-buffer the constant operands when they are big enough that
    # double-buffering would pressure VMEM (realistic C on v7x's 64 MiB).
    single_buf_consts = C >= 512

    def const_spec(shape):
        idx = lambda b: (0,) * len(shape)
        if single_buf_consts:
            return pl.BlockSpec(shape, idx, pipeline_mode=pl.Buffered(1))
        return pl.BlockSpec(shape, idx)

    merged = pl.pallas_call(
        functools.partial(attnpool_kernel, num_heads=num_heads),
        grid=(grid_steps,),
        in_specs=[
            pl.BlockSpec((TB, N, C), lambda b: (b, 0, 0)),  # spatial tokens (bf16)
            const_spec((N, C)),                              # pos rows (bf16)
            const_spec((1, C)),                              # pre-scaled cls query
            const_spec((1, H)),                              # precomputed cls score
            const_spec((1, C)),                              # cls value row
            const_spec((C, 2 * C)),                          # fused K/V weight
            const_spec((1, 2 * C)),                          # fused K/V bias
            const_spec((C, H)),                              # head selector
            const_spec((H, C)),                              # head expansion
            const_spec((C, C)),                              # out_proj weight
            const_spec((1, C)),                              # out_proj bias
            const_spec((C, Dout)),                           # c_proj weight
            const_spec((1, Dout)),                           # c_proj bias
        ],
        out_specs=pl.BlockSpec((TB, OUT_LANES), lambda b: (b, 0)),
        out_shape=jax.ShapeDtypeStruct((Bp, OUT_LANES), jnp.float32),
        compiler_params=pltpu.CompilerParams(
            dimension_semantics=("parallel",),
            # plenty at toy sizes; raise (and keep Buffered(1) consts) for
            # realistic C on v7x's 64 MiB VMEM
            vmem_limit_bytes=32 * 1024 * 1024),
    )(x_perm, pos_x, q_cls, s_cls, v_cls, wkv_t, bkv, hasn, hexp,
      wo_t, bo, wc_t, bc)

    # glue: torch's x.squeeze(0) and att_map[:, :, 1:] shape conventions
    y = merged[:B, :Dout].reshape(B, 1, Dout)
    att = merged[:B, Dout:Dout + N].reshape(B, 1, N)
    y_out = jnp.squeeze(y, axis=0) if B == 1 else y
    return y_out, att


# --------------------------- pure-JAX reference ---------------------------- #
def ref_forward(x, params, num_heads):
    B, C, N = x.shape
    pos = params["pos_emb"]
    cls = params["cls_token"]
    xp = jnp.transpose(x, (0, 2, 1))
    cls_tok = jnp.broadcast_to(cls + pos[:, :1, :], (B, 1, C))
    seq = jnp.concatenate([cls_tok, xp], axis=1) + pos
    Wq, Wk, Wv = jnp.split(params["in_proj_w"], 3, axis=0)
    bq, bk, bv = jnp.split(params["in_proj_b"], 3)
    q = seq[:, :1, :] @ Wq.T + bq
    k = seq @ Wk.T + bk
    v = seq @ Wv.T + bv
    hd = C // num_heads
    S = N + 1
    qh = q.reshape(B, 1, num_heads, hd).transpose(0, 2, 1, 3)
    kh = k.reshape(B, S, num_heads, hd).transpose(0, 2, 1, 3)
    vh = v.reshape(B, S, num_heads, hd).transpose(0, 2, 1, 3)
    s = jnp.einsum("bhqd,bhkd->bhqk", qh, kh) / math.sqrt(hd)
    p = jax.nn.softmax(s, axis=-1)
    o = jnp.einsum("bhqk,bhkd->bhqd", p, vh).transpose(0, 2, 1, 3).reshape(B, 1, C)
    o = o @ params["out_proj_w"].T + params["out_proj_b"]
    y = o @ params["c_proj_w"].T + params["c_proj_b"]
    att = p.mean(axis=1)
    y = jnp.squeeze(y, axis=0) if B == 1 else y
    return y, att[:, :, 1:]


# --------------------------------- main ------------------------------------ #
if __name__ == "__main__":
    B, embed_dim, spacial_dim = 16, 32, 16
    num_heads, output_dim = 4, 8

    key = jax.random.PRNGKey(0)
    ks = jax.random.split(key, 9)
    params = {
        "pos_emb": jax.random.normal(ks[0], (1, spacial_dim + 1, embed_dim),
                                     jnp.float32) / embed_dim,
        "cls_token": jax.random.normal(ks[1], (1, 1, embed_dim), jnp.float32),
        "in_proj_w": jax.random.normal(ks[2], (3 * embed_dim, embed_dim),
                                       jnp.float32) / math.sqrt(embed_dim),
        "in_proj_b": jax.random.normal(ks[3], (3 * embed_dim,), jnp.float32) * 0.02,
        "out_proj_w": jax.random.normal(ks[4], (embed_dim, embed_dim),
                                        jnp.float32) / math.sqrt(embed_dim),
        "out_proj_b": jax.random.normal(ks[5], (embed_dim,), jnp.float32) * 0.02,
        "c_proj_w": jax.random.normal(ks[6], (output_dim, embed_dim),
                                      jnp.float32) / math.sqrt(embed_dim),
        "c_proj_b": jax.random.normal(ks[7], (output_dim,), jnp.float32) * 0.02,
    }
    x = jax.random.normal(ks[8], (B, embed_dim, spacial_dim), jnp.float32)

    y, att = attention_pool2d(x, params, num_heads)
    jax.block_until_ready((y, att))

    y_ref, att_ref = ref_forward(x, params, num_heads)
    assert y.shape == y_ref.shape and att.shape == att_ref.shape
    # bf16 MXU operands / bf16-streamed x (f32 accumulation, f32 softmax)
    assert jnp.allclose(y, y_ref, rtol=3e-2, atol=3e-2), \
        float(jnp.max(jnp.abs(y - y_ref)))
    assert jnp.allclose(att, att_ref, rtol=3e-2, atol=3e-2), \
        float(jnp.max(jnp.abs(att - att_ref)))

    print("KERNEL_OK")
</pallas_src>

<mosaic_0001>
module attributes {stable_mosaic.version = 11 : i64} {
  func.func @attnpool_kernel(%arg0: i32, %arg1: memref<16x16x32xbf16, #tpu.memory_space<vmem>>, %arg2: memref<16x32xbf16, #tpu.memory_space<vmem>>, %arg3: memref<1x32xf32, #tpu.memory_space<vmem>>, %arg4: memref<1x4xf32, #tpu.memory_space<vmem>>, %arg5: memref<1x32xf32, #tpu.memory_space<vmem>>, %arg6: memref<32x64xbf16, #tpu.memory_space<vmem>>, %arg7: memref<1x64xf32, #tpu.memory_space<vmem>>, %arg8: memref<32x4xbf16, #tpu.memory_space<vmem>>, %arg9: memref<4x32xbf16, #tpu.memory_space<vmem>>, %arg10: memref<32x32xbf16, #tpu.memory_space<vmem>>, %arg11: memref<1x32xf32, #tpu.memory_space<vmem>>, %arg12: memref<32x8xbf16, #tpu.memory_space<vmem>>, %arg13: memref<1x8xf32, #tpu.memory_space<vmem>>, %arg14: memref<16x128xf32, #tpu.memory_space<vmem>>) attributes {dimension_semantics = [#tpu.dimension_semantics<parallel>], iteration_bounds = array<i64: 1>, scalar_prefetch = 0 : i64, scratch_operands = 0 : i64, tpu.core_type = #tpu.core_type<tc>, window_params = [{transform_indices = @transform_0, window_bounds = array<i64: 16, 16, 32>}, {pipeline_mode = #tpu.pipeline_mode<synchronous>, transform_indices = @transform_1, window_bounds = array<i64: 16, 32>}, {pipeline_mode = #tpu.pipeline_mode<synchronous>, transform_indices = @transform_2, window_bounds = array<i64: 1, 32>}, {pipeline_mode = #tpu.pipeline_mode<synchronous>, transform_indices = @transform_3, window_bounds = array<i64: 1, 4>}, {pipeline_mode = #tpu.pipeline_mode<synchronous>, transform_indices = @transform_4, window_bounds = array<i64: 1, 32>}, {pipeline_mode = #tpu.pipeline_mode<synchronous>, transform_indices = @transform_5, window_bounds = array<i64: 32, 64>}, {pipeline_mode = #tpu.pipeline_mode<synchronous>, transform_indices = @transform_6, window_bounds = array<i64: 1, 64>}, {pipeline_mode = #tpu.pipeline_mode<synchronous>, transform_indices = @transform_7, window_bounds = array<i64: 32, 4>}, {pipeline_mode = #tpu.pipeline_mode<synchronous>, transform_indices = @transform_8, window_bounds = array<i64: 4, 32>}, {pipeline_mode = #tpu.pipeline_mode<synchronous>, transform_indices = @transform_9, window_bounds = array<i64: 32, 32>}, {pipeline_mode = #tpu.pipeline_mode<synchronous>, transform_indices = @transform_10, window_bounds = array<i64: 1, 32>}, {pipeline_mode = #tpu.pipeline_mode<synchronous>, transform_indices = @transform_11, window_bounds = array<i64: 32, 8>}, {pipeline_mode = #tpu.pipeline_mode<synchronous>, transform_indices = @transform_12, window_bounds = array<i64: 1, 8>}, {transform_indices = @transform_13, window_bounds = array<i64: 16, 128>}]} {
    %c0 = arith.constant 0 : index
    %c0_0 = arith.constant 0 : index
    %c0_1 = arith.constant 0 : index
    %0 = vector.load %arg1[%c0, %c0_0, %c0_1] : memref<16x16x32xbf16, #tpu.memory_space<vmem>>, vector<16x16x32xbf16>
    %c0_2 = arith.constant 0 : index
    %c0_3 = arith.constant 0 : index
    %1 = vector.load %arg2[%c0_2, %c0_3] : memref<16x32xbf16, #tpu.memory_space<vmem>>, vector<16x32xbf16>
    %2 = vector.shape_cast %1 : vector<16x32xbf16> to vector<1x16x32xbf16>
    %3 = vector.broadcast %2 : vector<1x16x32xbf16> to vector<16x16x32xbf16>
    %4 = arith.addf %0, %3 : vector<16x16x32xbf16>
    %5 = vector.shape_cast %4 : vector<16x16x32xbf16> to vector<256x32xbf16>
    %c0_4 = arith.constant 0 : index
    %c0_5 = arith.constant 0 : index
    %6 = vector.load %arg6[%c0_4, %c0_5] : memref<32x64xbf16, #tpu.memory_space<vmem>>, vector<32x64xbf16>
    %cst = arith.constant dense<0.000000e+00> : vector<256x64xf32>
    %7 = tpu.matmul %5, %6, %cst {dimension_numbers = #tpu.dot_dimension_numbers<[1], [0], [0], [1], [0, 0, 1, 1], [], []>} : vector<256x32xbf16>, vector<32x64xbf16>, vector<256x64xf32> -> vector<256x64xf32>
    %c0_6 = arith.constant 0 : index
    %c0_7 = arith.constant 0 : index
    %8 = vector.load %arg7[%c0_6, %c0_7] : memref<1x64xf32, #tpu.memory_space<vmem>>, vector<1x64xf32>
    %9 = vector.broadcast %8 : vector<1x64xf32> to vector<256x64xf32>
    %10 = arith.addf %7, %9 : vector<256x64xf32>
    %11 = vector.extract_strided_slice %10 {offsets = [0, 0], sizes = [256, 32], strides = [1, 1]} : vector<256x64xf32> to vector<256x32xf32>
    %12 = vector.shape_cast %11 : vector<256x32xf32> to vector<16x16x32xf32>
    %13 = vector.extract_strided_slice %10 {offsets = [0, 32], sizes = [256, 32], strides = [1, 1]} : vector<256x64xf32> to vector<256x32xf32>
    %14 = vector.shape_cast %13 : vector<256x32xf32> to vector<16x16x32xf32>
    %c0_8 = arith.constant 0 : index
    %c0_9 = arith.constant 0 : index
    %15 = vector.load %arg3[%c0_8, %c0_9] : memref<1x32xf32, #tpu.memory_space<vmem>>, vector<1x32xf32>
    %16 = vector.shape_cast %15 : vector<1x32xf32> to vector<1x1x32xf32>
    %17 = vector.broadcast %16 : vector<1x1x32xf32> to vector<16x16x32xf32>
    %18 = arith.mulf %12, %17 : vector<16x16x32xf32>
    %19 = arith.truncf %18 : vector<16x16x32xf32> to vector<16x16x32xbf16>
    %20 = vector.shape_cast %19 : vector<16x16x32xbf16> to vector<256x32xbf16>
    %c0_10 = arith.constant 0 : index
    %c0_11 = arith.constant 0 : index
    %21 = vector.load %arg8[%c0_10, %c0_11] : memref<32x4xbf16, #tpu.memory_space<vmem>>, vector<32x4xbf16>
    %cst_12 = arith.constant dense<0.000000e+00> : vector<256x4xf32>
    %22 = tpu.matmul %20, %21, %cst_12 {dimension_numbers = #tpu.dot_dimension_numbers<[1], [0], [0], [1], [0, 0, 1, 1], [], []>} : vector<256x32xbf16>, vector<32x4xbf16>, vector<256x4xf32> -> vector<256x4xf32>
    %23 = vector.shape_cast %22 : vector<256x4xf32> to vector<16x16x4xf32>
    %c0_13 = arith.constant 0 : index
    %c0_14 = arith.constant 0 : index
    %24 = vector.load %arg4[%c0_13, %c0_14] : memref<1x4xf32, #tpu.memory_space<vmem>>, vector<1x4xf32>
    %25 = vector.shape_cast %24 : vector<1x4xf32> to vector<1x1x4xf32>
    %cst_15 = arith.constant dense<0xFF800000> : vector<16x4xf32>
    %26 = vector.multi_reduction <maximumf>, %23, %cst_15 [1] : vector<16x16x4xf32> to vector<16x4xf32>
    %27 = vector.shape_cast %26 : vector<16x4xf32> to vector<16x1x4xf32>
    %28 = vector.broadcast %25 : vector<1x1x4xf32> to vector<16x1x4xf32>
    %29 = arith.maximumf %27, %28 : vector<16x1x4xf32>
    %30 = vector.broadcast %25 : vector<1x1x4xf32> to vector<16x1x4xf32>
    %31 = arith.subf %30, %29 : vector<16x1x4xf32>
    %32 = math.exp %31 : vector<16x1x4xf32>
    %33 = vector.broadcast %29 : vector<16x1x4xf32> to vector<16x16x4xf32>
    %34 = arith.subf %23, %33 : vector<16x16x4xf32>
    %35 = math.exp %34 : vector<16x16x4xf32>
    %cst_16 = arith.constant dense<0.000000e+00> : vector<16x4xf32>
    %36 = vector.multi_reduction <add>, %35, %cst_16 [1] : vector<16x16x4xf32> to vector<16x4xf32>
    %37 = vector.shape_cast %36 : vector<16x4xf32> to vector<16x1x4xf32>
    %38 = arith.addf %32, %37 : vector<16x1x4xf32>
    %39 = tpu.reciprocal %38 {approx = true} : vector<16x1x4xf32> -> vector<16x1x4xf32>
    %40 = arith.mulf %32, %39 : vector<16x1x4xf32>
    %41 = vector.broadcast %39 : vector<16x1x4xf32> to vector<16x16x4xf32>
    %42 = arith.mulf %35, %41 : vector<16x16x4xf32>
    %43 = vector.shape_cast %42 : vector<16x16x4xf32> to vector<256x4xf32>
    %44 = arith.truncf %43 : vector<256x4xf32> to vector<256x4xbf16>
    %c0_17 = arith.constant 0 : index
    %c0_18 = arith.constant 0 : index
    %45 = vector.load %arg9[%c0_17, %c0_18] : memref<4x32xbf16, #tpu.memory_space<vmem>>, vector<4x32xbf16>
    %cst_19 = arith.constant dense<0.000000e+00> : vector<256x32xf32>
    %46 = tpu.matmul %44, %45, %cst_19 {dimension_numbers = #tpu.dot_dimension_numbers<[1], [0], [0], [1], [0, 0, 1, 1], [], []>} : vector<256x4xbf16>, vector<4x32xbf16>, vector<256x32xf32> -> vector<256x32xf32>
    %47 = vector.shape_cast %46 : vector<256x32xf32> to vector<16x16x32xf32>
    %48 = arith.mulf %47, %14 : vector<16x16x32xf32>
    %cst_20 = arith.constant dense<0.000000e+00> : vector<16x32xf32>
    %49 = vector.multi_reduction <add>, %48, %cst_20 [1] : vector<16x16x32xf32> to vector<16x32xf32>
    %50 = vector.shape_cast %40 : vector<16x1x4xf32> to vector<16x4xf32>
    %51 = arith.truncf %50 : vector<16x4xf32> to vector<16x4xbf16>
    %c0_21 = arith.constant 0 : index
    %c0_22 = arith.constant 0 : index
    %52 = vector.load %arg9[%c0_21, %c0_22] : memref<4x32xbf16, #tpu.memory_space<vmem>>, vector<4x32xbf16>
    %cst_23 = arith.constant dense<0.000000e+00> : vector<16x32xf32>
    %53 = tpu.matmul %51, %52, %cst_23 {dimension_numbers = #tpu.dot_dimension_numbers<[1], [0], [0], [1], [0, 0, 1, 1], [], []>} : vector<16x4xbf16>, vector<4x32xbf16>, vector<16x32xf32> -> vector<16x32xf32>
    %c0_24 = arith.constant 0 : index
    %c0_25 = arith.constant 0 : index
    %54 = vector.load %arg5[%c0_24, %c0_25] : memref<1x32xf32, #tpu.memory_space<vmem>>, vector<1x32xf32>
    %55 = vector.broadcast %54 : vector<1x32xf32> to vector<16x32xf32>
    %56 = arith.mulf %53, %55 : vector<16x32xf32>
    %57 = arith.addf %49, %56 : vector<16x32xf32>
    %58 = arith.truncf %57 : vector<16x32xf32> to vector<16x32xbf16>
    %c0_26 = arith.constant 0 : index
    %c0_27 = arith.constant 0 : index
    %59 = vector.load %arg10[%c0_26, %c0_27] : memref<32x32xbf16, #tpu.memory_space<vmem>>, vector<32x32xbf16>
    %cst_28 = arith.constant dense<0.000000e+00> : vector<16x32xf32>
    %60 = tpu.matmul %58, %59, %cst_28 {dimension_numbers = #tpu.dot_dimension_numbers<[1], [0], [0], [1], [0, 0, 1, 1], [], []>} : vector<16x32xbf16>, vector<32x32xbf16>, vector<16x32xf32> -> vector<16x32xf32>
    %c0_29 = arith.constant 0 : index
    %c0_30 = arith.constant 0 : index
    %61 = vector.load %arg11[%c0_29, %c0_30] : memref<1x32xf32, #tpu.memory_space<vmem>>, vector<1x32xf32>
    %62 = vector.broadcast %61 : vector<1x32xf32> to vector<16x32xf32>
    %63 = arith.addf %60, %62 : vector<16x32xf32>
    %64 = arith.truncf %63 : vector<16x32xf32> to vector<16x32xbf16>
    %c0_31 = arith.constant 0 : index
    %c0_32 = arith.constant 0 : index
    %65 = vector.load %arg12[%c0_31, %c0_32] : memref<32x8xbf16, #tpu.memory_space<vmem>>, vector<32x8xbf16>
    %cst_33 = arith.constant dense<0.000000e+00> : vector<16x8xf32>
    %66 = tpu.matmul %64, %65, %cst_33 {dimension_numbers = #tpu.dot_dimension_numbers<[1], [0], [0], [1], [0, 0, 1, 1], [], []>} : vector<16x32xbf16>, vector<32x8xbf16>, vector<16x8xf32> -> vector<16x8xf32>
    %c0_34 = arith.constant 0 : index
    %c0_35 = arith.constant 0 : index
    %67 = vector.load %arg13[%c0_34, %c0_35] : memref<1x8xf32, #tpu.memory_space<vmem>>, vector<1x8xf32>
    %68 = vector.broadcast %67 : vector<1x8xf32> to vector<16x8xf32>
    %69 = arith.addf %66, %68 : vector<16x8xf32>
    %cst_36 = arith.constant dense<0.000000e+00> : vector<16x16xf32>
    %70 = vector.multi_reduction <add>, %42, %cst_36 [2] : vector<16x16x4xf32> to vector<16x16xf32>
    %cst_37 = arith.constant 4.000000e+00 : f32
    %71 = vector.broadcast %cst_37 : f32 to vector<16x16xf32>
    %72 = arith.divf %70, %71 : vector<16x16xf32>
    %cst_38 = arith.constant 0.000000e+00 : f32
    %73 = vector.broadcast %cst_38 : f32 to vector<16x104xf32>
    %74 = tpu.concatenate %69, %72, %73 in 1 : vector<16x8xf32>, vector<16x16xf32>, vector<16x104xf32> -> vector<16x128xf32>
    %c0_39 = arith.constant 0 : index
    %c0_40 = arith.constant 0 : index
    %75 = vector.load %arg14[%c0_39, %c0_40] : memref<16x128xf32, #tpu.memory_space<vmem>>, vector<16x128xf32>
    tpu.vector_store %arg14[%c0_39, %c0_40], %74 {strides = array<i32>} : memref<16x128xf32, #tpu.memory_space<vmem>>, vector<16x128xf32>,
    return
  }
  func.func @transform_0(%arg0: i32) -> (i32, i32, i32) {
    %c0_i32 = arith.constant 0 : i32
    %c0_i32_0 = arith.constant 0 : i32
    %c0_i32_1 = arith.constant 0 : i32
    return %arg0, %c0_i32, %c0_i32_0 : i32, i32, i32
  }
  func.func @transform_1(%arg0: i32) -> (i32, i32) {
    %c0_i32 = arith.constant 0 : i32
    %c0_i32_0 = arith.constant 0 : i32
    %c0_i32_1 = arith.constant 0 : i32
    return %c0_i32, %c0_i32_0 : i32, i32
  }
  func.func @transform_2(%arg0: i32) -> (i32, i32) {
    %c0_i32 = arith.constant 0 : i32
    %c0_i32_0 = arith.constant 0 : i32
    %c0_i32_1 = arith.constant 0 : i32
    return %c0_i32, %c0_i32_0 : i32, i32
  }
  func.func @transform_3(%arg0: i32) -> (i32, i32) {
    %c0_i32 = arith.constant 0 : i32
    %c0_i32_0 = arith.constant 0 : i32
    %c0_i32_1 = arith.constant 0 : i32
    return %c0_i32, %c0_i32_0 : i32, i32
  }
  func.func @transform_4(%arg0: i32) -> (i32, i32) {
    %c0_i32 = arith.constant 0 : i32
    %c0_i32_0 = arith.constant 0 : i32
    %c0_i32_1 = arith.constant 0 : i32
    return %c0_i32, %c0_i32_0 : i32, i32
  }
  func.func @transform_5(%arg0: i32) -> (i32, i32) {
    %c0_i32 = arith.constant 0 : i32
    %c0_i32_0 = arith.constant 0 : i32
    %c0_i32_1 = arith.constant 0 : i32
    return %c0_i32, %c0_i32_0 : i32, i32
  }
  func.func @transform_6(%arg0: i32) -> (i32, i32) {
    %c0_i32 = arith.constant 0 : i32
    %c0_i32_0 = arith.constant 0 : i32
    %c0_i32_1 = arith.constant 0 : i32
    return %c0_i32, %c0_i32_0 : i32, i32
  }
  func.func @transform_7(%arg0: i32) -> (i32, i32) {
    %c0_i32 = arith.constant 0 : i32
    %c0_i32_0 = arith.constant 0 : i32
    %c0_i32_1 = arith.constant 0 : i32
    return %c0_i32, %c0_i32_0 : i32, i32
  }
  func.func @transform_8(%arg0: i32) -> (i32, i32) {
    %c0_i32 = arith.constant 0 : i32
    %c0_i32_0 = arith.constant 0 : i32
    %c0_i32_1 = arith.constant 0 : i32
    return %c0_i32, %c0_i32_0 : i32, i32
  }
  func.func @transform_9(%arg0: i32) -> (i32, i32) {
    %c0_i32 = arith.constant 0 : i32
    %c0_i32_0 = arith.constant 0 : i32
    %c0_i32_1 = arith.constant 0 : i32
    return %c0_i32, %c0_i32_0 : i32, i32
  }
  func.func @transform_10(%arg0: i32) -> (i32, i32) {
    %c0_i32 = arith.constant 0 : i32
    %c0_i32_0 = arith.constant 0 : i32
    %c0_i32_1 = arith.constant 0 : i32
    return %c0_i32, %c0_i32_0 : i32, i32
  }
  func.func @transform_11(%arg0: i32) -> (i32, i32) {
    %c0_i32 = arith.constant 0 : i32
    %c0_i32_0 = arith.constant 0 : i32
    %c0_i32_1 = arith.constant 0 : i32
    return %c0_i32, %c0_i32_0 : i32, i32
  }
  func.func @transform_12(%arg0: i32) -> (i32, i32) {
    %c0_i32 = arith.constant 0 : i32
    %c0_i32_0 = arith.constant 0 : i32
    %c0_i32_1 = arith.constant 0 : i32
    return %c0_i32, %c0_i32_0 : i32, i32
  }
  func.func @transform_13(%arg0: i32) -> (i32, i32) {
    %c0_i32 = arith.constant 0 : i32
    %c0_i32_0 = arith.constant 0 : i32
    return %arg0, %c0_i32 : i32, i32
  }
}

</mosaic_0001>

<llo_original>
// kernel: tpu_custom_call.1
$region0: #{tpu_custom_call.1}
  #allocation0 [shape = 'u32[]', space=smem, size = 0x4, offset = 0x4, fixed_abs, tag = 'smem constant byte address 0x4 - core index']
  #allocation1 [shape = 'u32[144,128]{1,0:T(1,128)}', space=vmem, size = 0x12000, scoped, tag = 'internal scratch']
  %s0 = inlined_call_operand.hbm [shape: bf16[16,16,32], index: 0, kind: input, shape index: {}]
  %s1 = inlined_call_operand.hbm [shape: bf16[16,32], index: 1, kind: input, shape index: {}]
  %s2 = inlined_call_operand.vmem [shape: f32[1,32], index: 2, kind: input, shape index: {}]
  %s3 = inlined_call_operand.vmem [shape: f32[1,4], index: 3, kind: input, shape index: {}]
  %s4 = inlined_call_operand.vmem [shape: f32[1,32], index: 4, kind: input, shape index: {}]
  %s5 = inlined_call_operand.vmem [shape: bf16[32,64], index: 5, kind: input, shape index: {}]
  %s6 = inlined_call_operand.vmem [shape: f32[1,64], index: 6, kind: input, shape index: {}]
  %s7 = inlined_call_operand.vmem [shape: bf16[32,4], index: 7, kind: input, shape index: {}]
  %s8 = inlined_call_operand.vmem [shape: bf16[4,32], index: 8, kind: input, shape index: {}]
  %s9 = inlined_call_operand.vmem [shape: bf16[32,32], index: 9, kind: input, shape index: {}]
  %s10 = inlined_call_operand.vmem [shape: f32[1,32], index: 10, kind: input, shape index: {}]
  %s11 = inlined_call_operand.vmem [shape: bf16[32,8], index: 11, kind: input, shape index: {}]
  %s12 = inlined_call_operand.vmem [shape: f32[1,8], index: 12, kind: input, shape index: {}]
  %s13 = inlined_call_operand.hbm [shape: f32[16,128], index: 13, kind: output, shape index: {}]
  %s14 = sld [smem:[#allocation0]]
  $region70: #{tpu_custom_call.1} parent=0
    _
  %s16 = ssub.s32 1, %s14
  %s17 = scalar_select 0, %s16, %s14
  $region1: #{tpu_custom_call.1} parent=0
    #allocation2 [shape = 'u8[65536]{0}', space=vmem, size = 0x10000, scoped, tag = 'input window, operand 0, single buffered']
    #allocation3 [shape = 's32[1]{0}', space=sflag, size = 0x4, scoped, tag = 'scoped memory for tpu_custom_call.1']
    #allocation4 [shape = 's32[1]{0}', space=sflag, size = 0x4, scoped, tag = 'scoped memory for tpu_custom_call.1']
    #allocation5 [shape = 'u8[4096]{0}', space=vmem, size = 0x1000, scoped, tag = 'input window, operand 1, single buffered']
    #allocation6 [shape = 's32[1]{0}', space=sflag, size = 0x4, scoped, tag = 'scoped memory for tpu_custom_call.1']
    #allocation7 [shape = 'u8[8192]{0}', space=vmem, size = 0x2000, scoped, tag = 'output window, operand 0, single buffered']
    %18 = vsyncpa [#allocation3], 0
    %19 = vsyncpa [#allocation6], 0
    %20 = vsyncpa [#allocation4], 0
    // Predicated region
    $region2: #{tpu_custom_call.1} parent=1 // pred_check
      _
    $region3: #{tpu_custom_call.1} parent=1 // pred_check_branch
      %22 = sbr.rel (0) target = $region5
    $region4: #{tpu_custom_call.1} parent=1 // pred_region
      %s24 = ssub.s32 2048, 2048
      %25 = vsyncadd [#allocation3], %s24
      %s26 = sshll.u32 [#allocation2], 4
      %s27 = int_to_ptr.vmem [resolvable:$true] %s26
      %32 = dma.hbm_to_vmem [thread:$0]  %s0, 2048, %s27, [#allocation3], 64, 64, 4
    $region5: #{tpu_custom_call.1} parent=1 // pred_fallthru
      _
    // Predicated region
    $region6: #{tpu_custom_call.1} parent=1 // pred_check
      _
    $region7: #{tpu_custom_call.1} parent=1 // pred_check_branch
      %34 = sbr.rel (0) target = $region9
    $region8: #{tpu_custom_call.1} parent=1 // pred_region
      %s36 = ssub.s32 128, 128
      %37 = vsyncadd [#allocation6], %s36
      %s38 = sshll.u32 [#allocation5], 4
      %s39 = int_to_ptr.vmem [resolvable:$true] %s38
      %44 = dma.hbm_to_vmem [thread:$0]  %s1, 128, %s39, [#allocation6], 64, 64, 4
    $region9: #{tpu_custom_call.1} parent=1 // pred_fallthru
      _
    // Predicated region
    $region10: #{tpu_custom_call.1} parent=1 // pred_check
      _
    $region11: #{tpu_custom_call.1} parent=1 // pred_check_branch
      %46 = sbr.rel (0) target = $region13
    $region12: #{tpu_custom_call.1} parent=1 // pred_region
      _
    $region13: #{tpu_custom_call.1} parent=1 // pred_fallthru
      _
    // Predicated region
    $region14: #{tpu_custom_call.1} parent=1 // pred_check
      _
    $region15: #{tpu_custom_call.1} parent=1 // pred_check_branch
      %48 = sbr.rel (0) target = $region17
    $region16: #{tpu_custom_call.1} parent=1 // pred_region
      _
    $region17: #{tpu_custom_call.1} parent=1 // pred_fallthru
      _
    // Predicated region
    $region18: #{tpu_custom_call.1} parent=1 // pred_check
      _
    $region19: #{tpu_custom_call.1} parent=1 // pred_check_branch
      %50 = sbr.rel (0) target = $region21
    $region20: #{tpu_custom_call.1} parent=1 // pred_region
      _
    $region21: #{tpu_custom_call.1} parent=1 // pred_fallthru
      _
    // Predicated region
    $region22: #{tpu_custom_call.1} parent=1 // pred_check
      _
    $region23: #{tpu_custom_call.1} parent=1 // pred_check_branch
      %52 = sbr.rel (0) target = $region25
    $region24: #{tpu_custom_call.1} parent=1 // pred_region
      _
    $region25: #{tpu_custom_call.1} parent=1 // pred_fallthru
      _
    // Predicated region
    $region26: #{tpu_custom_call.1} parent=1 // pred_check
      _
    $region27: #{tpu_custom_call.1} parent=1 // pred_check_branch
      %54 = sbr.rel (0) target = $region29
    $region28: #{tpu_custom_call.1} parent=1 // pred_region
      _
    $region29: #{tpu_custom_call.1} parent=1 // pred_fallthru
      _
    // Predicated region
    $region30: #{tpu_custom_call.1} parent=1 // pred_check
      _
    $region31: #{tpu_custom_call.1} parent=1 // pred_check_branch
      %56 = sbr.rel (0) target = $region33
    $region32: #{tpu_custom_call.1} parent=1 // pred_region
      _
    $region33: #{tpu_custom_call.1} parent=1 // pred_fallthru
      _
    // Predicated region
    $region34: #{tpu_custom_call.1} parent=1 // pred_check
      _
    $region35: #{tpu_custom_call.1} parent=1 // pred_check_branch
      %58 = sbr.rel (0) target = $region37
    $region36: #{tpu_custom_call.1} parent=1 // pred_region
      _
    $region37: #{tpu_custom_call.1} parent=1 // pred_fallthru
      _
    // Predicated region
    $region38: #{tpu_custom_call.1} parent=1 // pred_check
      _
    $region39: #{tpu_custom_call.1} parent=1 // pred_check_branch
      %60 = sbr.rel (0) target = $region41
    $region40: #{tpu_custom_call.1} parent=1 // pred_region
      _
    $region41: #{tpu_custom_call.1} parent=1 // pred_fallthru
      _
    // Predicated region
    $region42: #{tpu_custom_call.1} parent=1 // pred_check
      _
    $region43: #{tpu_custom_call.1} parent=1 // pred_check_branch
      %62 = sbr.rel (0) target = $region45
    $region44: #{tpu_custom_call.1} parent=1 // pred_region
      _
    $region45: #{tpu_custom_call.1} parent=1 // pred_fallthru
      _
    // Predicated region
    $region46: #{tpu_custom_call.1} parent=1 // pred_check
      _
    $region47: #{tpu_custom_call.1} parent=1 // pred_check_branch
      %64 = sbr.rel (0) target = $region49
    $region48: #{tpu_custom_call.1} parent=1 // pred_region
      _
    $region49: #{tpu_custom_call.1} parent=1 // pred_fallthru
      _
    // Predicated region
    $region50: #{tpu_custom_call.1} parent=1 // pred_check
      _
    $region51: #{tpu_custom_call.1} parent=1 // pred_check_branch
      %66 = sbr.rel (0) target = $region53
    $region52: #{tpu_custom_call.1} parent=1 // pred_region
      _
    $region53: #{tpu_custom_call.1} parent=1 // pred_fallthru
      _
    // Predicated region
    $region54: #{tpu_custom_call.1} parent=1 // pred_check
      _
    $region55: #{tpu_custom_call.1} parent=1 // pred_check_branch
      %68 = sbr.rel (0) target = $region57
    $region56: #{tpu_custom_call.1} parent=1 // pred_region
      %69 = dma.done [#allocation3], 2048
    $region57: #{tpu_custom_call.1} parent=1 // pred_fallthru
      _
    // Predicated region
    $region58: #{tpu_custom_call.1} parent=1 // pred_check
      _
    $region59: #{tpu_custom_call.1} parent=1 // pred_check_branch
      %71 = sbr.rel (0) target = $region61
    $region60: #{tpu_custom_call.1} parent=1 // pred_region
      %72 = dma.done [#allocation6], 128
    $region61: #{tpu_custom_call.1} parent=1 // pred_fallthru
      _
    %v74 = vld [vmem:[#allocation2] sm:$0xf]
    %v75 = vld [vmem:[#allocation2 + $0x4] sm:$0xf]
    %v76 = vld [vmem:[#allocation2 + $0x8] sm:$0xf]
    %v77 = vld [vmem:[#allocation2 + $0xc] sm:$0xf]
    %v78 = vld [vmem:[#allocation2 + $0x10] sm:$0xf]
    %v79 = vld [vmem:[#allocation2 + $0x14] sm:$0xf]
    %v80 = vld [vmem:[#allocation2 + $0x18] sm:$0xf]
    %v81 = vld [vmem:[#allocation2 + $0x1c] sm:$0xf]
    %v82 = vld [vmem:[#allocation2 + $0x20] sm:$0xf]
    %v83 = vld [vmem:[#allocation2 + $0x24] sm:$0xf]
    %v84 = vld [vmem:[#allocation2 + $0x28] sm:$0xf]
    %v85 = vld [vmem:[#allocation2 + $0x2c] sm:$0xf]
    %v86 = vld [vmem:[#allocation2 + $0x30] sm:$0xf]
    %v87 = vld [vmem:[#allocation2 + $0x34] sm:$0xf]
    %v88 = vld [vmem:[#allocation2 + $0x38] sm:$0xf]
    %v89 = vld [vmem:[#allocation2 + $0x3c] sm:$0xf]
    %v90 = vld [vmem:[#allocation2 + $0x40] sm:$0xf]
    %v91 = vld [vmem:[#allocation2 + $0x44] sm:$0xf]
    %v92 = vld [vmem:[#allocation2 + $0x48] sm:$0xf]
    %v93 = vld [vmem:[#allocation2 + $0x4c] sm:$0xf]
    %v94 = vld [vmem:[#allocation2 + $0x50] sm:$0xf]
    %v95 = vld [vmem:[#allocation2 + $0x54] sm:$0xf]
    %v96 = vld [vmem:[#allocation2 + $0x58] sm:$0xf]
    %v97 = vld [vmem:[#allocation2 + $0x5c] sm:$0xf]
    %v98 = vld [vmem:[#allocation2 + $0x60] sm:$0xf]
    %v99 = vld [vmem:[#allocation2 + $0x64] sm:$0xf]
    %v100 = vld [vmem:[#allocation2 + $0x68] sm:$0xf]
    %v101 = vld [vmem:[#allocation2 + $0x6c] sm:$0xf]
    %v102 = vld [vmem:[#allocation2 + $0x70] sm:$0xf]
    %v103 = vld [vmem:[#allocation2 + $0x74] sm:$0xf]
    %v104 = vld [vmem:[#allocation2 + $0x78] sm:$0xf]
    %v105 = vld [vmem:[#allocation2 + $0x7c] sm:$0xf]
    %v106 = vld [vmem:[#allocation5] sm:$0xf]
    %v107 = vld [vmem:[#allocation5 + $0x4] sm:$0xf]
    %v108 = vadd.bf16 %v74, %v106
    %v109 = vadd.bf16 %v75, %v107
    %v110 = vadd.bf16 %v76, %v106
    %v111 = vadd.bf16 %v77, %v107
    %v112 = vadd.bf16 %v78, %v106
    %v113 = vadd.bf16 %v79, %v107
    %v114 = vadd.bf16 %v80, %v106
    %v115 = vadd.bf16 %v81, %v107
    %v116 = vadd.bf16 %v82, %v106
    %v117 = vadd.bf16 %v83, %v107
    %v118 = vadd.bf16 %v84, %v106
    %v119 = vadd.bf16 %v85, %v107
    %v120 = vadd.bf16 %v86, %v106
    %v121 = vadd.bf16 %v87, %v107
    %v122 = vadd.bf16 %v88, %v106
    %v123 = vadd.bf16 %v89, %v107
    %v124 = vadd.bf16 %v90, %v106
    %v125 = vadd.bf16 %v91, %v107
    %v126 = vadd.bf16 %v92, %v106
    %v127 = vadd.bf16 %v93, %v107
    %v128 = vadd.bf16 %v94, %v106
    %v129 = vadd.bf16 %v95, %v107
    %v130 = vadd.bf16 %v96, %v106
    %v131 = vadd.bf16 %v97, %v107
    %v132 = vadd.bf16 %v98, %v106
    %v133 = vadd.bf16 %v99, %v107
    %v134 = vadd.bf16 %v100, %v106
    %v135 = vadd.bf16 %v101, %v107
    %v136 = vadd.bf16 %v102, %v106
    %v137 = vadd.bf16 %v103, %v107
    %v138 = vadd.bf16 %v104, %v106
    %v139 = vadd.bf16 %v105, %v107
    %v140 = vld [vmem:[%s5] sm:$0xf]
    %v141 = vld [vmem:[%s5 + $0x4] sm:$0xf]
    %v142 = vld [vmem:[%s5 + $0x8] sm:$0xf]
    %v143 = vld [vmem:[%s5 + $0xc] sm:$0xf]
    %v144 = vld [vmem:[%s6] sm:$0x1]
    %v146 = vlaneseq
    %v147 = vshrl.u32 %v146, 7
    %v148 = vsub.s32 0, %v147
    %v149 = vrot.slane %v144, %v148
    %v183 = vunpack.c.l.b16 %v108
    %v184 = vunpack.c.l.b16 %v109
    %v185 = vunpack.c.l.b16 %v110
    %v186 = vunpack.c.l.b16 %v111
    %v187 = vunpack.c.l.b16 %v112
    %v188 = vunpack.c.l.b16 %v113
    %v189 = vunpack.c.l.b16 %v114
    %v190 = vunpack.c.l.b16 %v115
    %v191 = vunpack.c.l.b16 %v116
    %v192 = vunpack.c.l.b16 %v117
    %v193 = vunpack.c.l.b16 %v118
    %v194 = vunpack.c.l.b16 %v119
    %v195 = vunpack.c.l.b16 %v120
    %v196 = vunpack.c.l.b16 %v121
    %v197 = vunpack.c.l.b16 %v122
    %v198 = vunpack.c.l.b16 %v123
    %v199 = vunpack.c.l.b16 %v124
    %v200 = vunpack.c.l.b16 %v125
    %v201 = vunpack.c.l.b16 %v126
    %v202 = vunpack.c.l.b16 %v127
    %v203 = vunpack.c.l.b16 %v128
    %v204 = vunpack.c.l.b16 %v129
    %v205 = vunpack.c.l.b16 %v130
    %v206 = vunpack.c.l.b16 %v131
    %v207 = vunpack.c.l.b16 %v132
    %v208 = vunpack.c.l.b16 %v133
    %v209 = vunpack.c.l.b16 %v134
    %v210 = vunpack.c.l.b16 %v135
    %v211 = vunpack.c.l.b16 %v136
    %v212 = vunpack.c.l.b16 %v137
    %v213 = vunpack.c.l.b16 %v138
    %v214 = vunpack.c.l.b16 %v139
    %v215 = vpack.c.b16 %v184, %v183
    %v216 = vpack.c.b16 %v186, %v185
    %v217 = vpack.c.b16 %v188, %v187
    %v218 = vpack.c.b16 %v190, %v189
    %v219 = vpack.c.b16 %v192, %v191
    %v220 = vpack.c.b16 %v194, %v193
    %v221 = vpack.c.b16 %v196, %v195
    %v222 = vpack.c.b16 %v198, %v197
    %v223 = vpack.c.b16 %v200, %v199
    %v224 = vpack.c.b16 %v202, %v201
    %v225 = vpack.c.b16 %v204, %v203
    %v226 = vpack.c.b16 %v206, %v205
    %v227 = vpack.c.b16 %v208, %v207
    %v228 = vpack.c.b16 %v210, %v209
    %v229 = vpack.c.b16 %v212, %v211
    %v230 = vpack.c.b16 %v214, %v213
    %v235 = vunpack.c.l.b16 %v140
    %v236 = vunpack.c.l.b16 %v141
    %v237 = vunpack.c.l.b16 %v142
    %v238 = vunpack.c.l.b16 %v143
    %v239 = vpack.c.b16 %v236, %v235
    %v240 = vpack.c.b16 %v238, %v237
    %vm243 = vcmask 261120
    %v245 = vsel %vm243, %v215, 0
    %v248 = vsel %vm243, %v216, 0
    %v251 = vsel %vm243, %v217, 0
    %v254 = vsel %vm243, %v218, 0
    %v257 = vsel %vm243, %v219, 0
    %v260 = vsel %vm243, %v220, 0
    %v263 = vsel %vm243, %v221, 0
    %v266 = vsel %vm243, %v222, 0
    %v269 = vsel %vm243, %v223, 0
    %v272 = vsel %vm243, %v224, 0
    %v275 = vsel %vm243, %v225, 0
    %v278 = vsel %vm243, %v226, 0
    %v281 = vsel %vm243, %v227, 0
    %v284 = vsel %vm243, %v228, 0
    %v287 = vsel %vm243, %v229, 0
    %v290 = vsel %vm243, %v230, 0
    %292 = vmatprep.subr.bf16.mxu0 0
    %293 = vmatpush1.bf16.msra.mxu0 0
    %294 = vmatprep.subr.bf16.mxu0 0
    %295 = vmatpush1.bf16.msra.mxu0 0
    %296 = vmatprep.subr.bf16.mxu0 0
    %297 = vmatpush1.bf16.msra.mxu0 0
    %298 = vmatprep.subr.bf16.mxu0 0
    %299 = vmatpush1.bf16.msra.mxu0 0
    %300 = vmatprep.subr.bf16.mxu0 0
    %301 = vmatpush1.bf16.msra.mxu0 0
    %302 = vmatprep.subr.bf16.mxu0 0
    %303 = vmatpush1.bf16.msra.mxu0 0
    %304 = vmatprep.subr.bf16.mxu0 0
    %305 = vmatpush1.bf16.msra.mxu0 %v240
    %306 = vmatprep.subr.bf16.mxu0 0
    %307 = vmatpush1.bf16.msra.mxu0 %v239
    %308 = vmatprep.subr.bf16.mxu0 0
    %309 = vmatpush2.bf16.msra.mxu0 0
    %310 = vmatprep.subr.bf16.mxu0 0
    %311 = vmatpush2.bf16.msra.mxu0 0
    %312 = vmatprep.subr.bf16.mxu0 0
    %313 = vmatpush2.bf16.msra.mxu0 0
    %314 = vmatprep.subr.bf16.mxu0 0
    %315 = vmatpush2.bf16.msra.mxu0 0
    %316 = vmatprep.subr.bf16.mxu0 0
    %317 = vmatpush2.bf16.msra.mxu0 0
    %318 = vmatprep.subr.bf16.mxu0 0
    %319 = vmatpush2.bf16.msra.mxu0 0
    %320 = vmatprep.subr.bf16.mxu0 0
    %321 = vmatpush2.bf16.msra.mxu0 0
    %322 = vmatprep.subr.bf16.mxu0 0
    %323 = vmatpush2.bf16.msra.mxu0 0
    %324 = vmatprep.mubr.bf16.mxu0 0
    %325 = vmatmul.mubr.bf16.gmra.mxu0 %v245
    %v326 = vpop.f32.mrf.mxu0
    %v327 = vadd.f32 %v149, %v326
    %v328 = vpop.f32.mrf.mxu0
    %v329 = vpop.f32.mrf.mxu0
    %v330 = vadd.f32 %v149, %v329
    %v331 = vpop.f32.mrf.mxu0
    %332 = vmatprep.mubr.bf16.mxu0 0
    %333 = vmatmul.mubr.bf16.gmra.mxu0 %v248
    %v334 = vpop.f32.mrf.mxu0
    %v335 = vadd.f32 %v149, %v334
    %v336 = vpop.f32.mrf.mxu0
    %v337 = vpop.f32.mrf.mxu0
    %v338 = vadd.f32 %v149, %v337
    %v339 = vpop.f32.mrf.mxu0
    %340 = vmatprep.mubr.bf16.mxu0 0
    %341 = vmatmul.mubr.bf16.gmra.mxu0 %v251
    %v342 = vpop.f32.mrf.mxu0
    %v343 = vadd.f32 %v149, %v342
    %v344 = vpop.f32.mrf.mxu0
    %v345 = vpop.f32.mrf.mxu0
    %v346 = vadd.f32 %v149, %v345
    %v347 = vpop.f32.mrf.mxu0
    %348 = vmatprep.mubr.bf16.mxu0 0
    %349 = vmatmul.mubr.bf16.gmra.mxu0 %v254
    %v350 = vpop.f32.mrf.mxu0
    %v351 = vadd.f32 %v149, %v350
    %v352 = vpop.f32.mrf.mxu0
    %v353 = vpop.f32.mrf.mxu0
    %v354 = vadd.f32 %v149, %v353
    %v355 = vpop.f32.mrf.mxu0
    %356 = vmatprep.mubr.bf16.mxu0 0
    %357 = vmatmul.mubr.bf16.gmra.mxu0 %v257
    %v358 = vpop.f32.mrf.mxu0
    %v359 = vadd.f32 %v149, %v358
    %v360 = vpop.f32.mrf.mxu0
    %v361 = vpop.f32.mrf.mxu0
    %v362 = vadd.f32 %v149, %v361
    %v363 = vpop.f32.mrf.mxu0
    %364 = vmatprep.mubr.bf16.mxu0 0
    %365 = vmatmul.mubr.bf16.gmra.mxu0 %v260
    %v366 = vpop.f32.mrf.mxu0
    %v367 = vadd.f32 %v149, %v366
    %v368 = vpop.f32.mrf.mxu0
    %v369 = vpop.f32.mrf.mxu0
    %v370 = vadd.f32 %v149, %v369
    %v371 = vpop.f32.mrf.mxu0
    %372 = vmatprep.mubr.bf16.mxu0 0
    %373 = vmatmul.mubr.bf16.gmra.mxu0 %v263
    %v374 = vpop.f32.mrf.mxu0
    %v375 = vadd.f32 %v149, %v374
    %v376 = vpop.f32.mrf.mxu0
    %v377 = vpop.f32.mrf.mxu0
    %v378 = vadd.f32 %v149, %v377
    %v379 = vpop.f32.mrf.mxu0
    %380 = vmatprep.mubr.bf16.mxu0 0
    %381 = vmatmul.mubr.bf16.gmra.mxu0 %v266
    %v382 = vpop.f32.mrf.mxu0
    %v383 = vadd.f32 %v149, %v382
    %v384 = vpop.f32.mrf.mxu0
    %v385 = vpop.f32.mrf.mxu0
    %v386 = vadd.f32 %v149, %v385
    %v387 = vpop.f32.mrf.mxu0
    %388 = vmatprep.mubr.bf16.mxu0 0
    %389 = vmatmul.mubr.bf16.gmra.mxu0 %v269
    %v390 = vpop.f32.mrf.mxu0
    %v391 = vadd.f32 %v149, %v390
    %v392 = vpop.f32.mrf.mxu0
    %v393 = vpop.f32.mrf.mxu0
    %v394 = vadd.f32 %v149, %v393
    %v395 = vpop.f32.mrf.mxu0
    %396 = vmatprep.mubr.bf16.mxu0 0
    %397 = vmatmul.mubr.bf16.gmra.mxu0 %v272
    %v398 = vpop.f32.mrf.mxu0
    %v399 = vadd.f32 %v149, %v398
    %v400 = vpop.f32.mrf.mxu0
    %v401 = vpop.f32.mrf.mxu0
    %v402 = vadd.f32 %v149, %v401
    %v403 = vpop.f32.mrf.mxu0
    %404 = vmatprep.mubr.bf16.mxu0 0
    %405 = vmatmul.mubr.bf16.gmra.mxu0 %v275
    %v406 = vpop.f32.mrf.mxu0
    %v407 = vadd.f32 %v149, %v406
    %v408 = vpop.f32.mrf.mxu0
    %v409 = vpop.f32.mrf.mxu0
    %v410 = vadd.f32 %v149, %v409
    %v411 = vpop.f32.mrf.mxu0
    %412 = vmatprep.mubr.bf16.mxu0 0
    %413 = vmatmul.mubr.bf16.gmra.mxu0 %v278
    %v414 = vpop.f32.mrf.mxu0
    %v415 = vadd.f32 %v149, %v414
    %v416 = vpop.f32.mrf.mxu0
    %v417 = vpop.f32.mrf.mxu0
    %v418 = vadd.f32 %v149, %v417
    %v419 = vpop.f32.mrf.mxu0
    %420 = vmatprep.mubr.bf16.mxu0 0
    %421 = vmatmul.mubr.bf16.gmra.mxu0 %v281
    %v422 = vpop.f32.mrf.mxu0
    %v423 = vadd.f32 %v149, %v422
    %v424 = vpop.f32.mrf.mxu0
    %v425 = vpop.f32.mrf.mxu0
    %v426 = vadd.f32 %v149, %v425
    %v427 = vpop.f32.mrf.mxu0
    %428 = vmatprep.mubr.bf16.mxu0 0
    %429 = vmatmul.mubr.bf16.gmra.mxu0 %v284
    %v430 = vpop.f32.mrf.mxu0
    %v431 = vadd.f32 %v149, %v430
    %v432 = vpop.f32.mrf.mxu0
    %v433 = vpop.f32.mrf.mxu0
    %v434 = vadd.f32 %v149, %v433
    %v435 = vpop.f32.mrf.mxu0
    %436 = vmatprep.mubr.bf16.mxu0 0
    %437 = vmatmul.mubr.bf16.gmra.mxu0 %v287
    %v438 = vpop.f32.mrf.mxu0
    %v439 = vadd.f32 %v149, %v438
    %v440 = vpop.f32.mrf.mxu0
    %v441 = vpop.f32.mrf.mxu0
    %v442 = vadd.f32 %v149, %v441
    %v443 = vpop.f32.mrf.mxu0
    %444 = vmatprep.mubr.bf16.mxu0 0
    %445 = vmatmul.mubr.bf16.gmra.mxu0 %v290
    %v446 = vpop.f32.mrf.mxu0
    %v447 = vadd.f32 %v149, %v446
    %v448 = vpop.f32.mrf.mxu0
    %v449 = vpop.f32.mrf.mxu0
    %v450 = vadd.f32 %v149, %v449
    %v451 = vpop.f32.mrf.mxu0
    %452 = vdwg.mxu0
    %v453 = vld [vmem:[%s2] sm:$0x1]
    %v455 = vlaneseq
    %v456 = vshrl.u32 %v455, 7
    %v457 = vsub.s32 0, %v456
    %v458 = vrot.slane %v453, %v457
    %v460 = vmul.f32 %v327, %v458
    %v461 = vmul.f32 %v330, %v458
    %v462 = vmul.f32 %v335, %v458
    %v463 = vmul.f32 %v338, %v458
    %v464 = vmul.f32 %v343, %v458
    %v465 = vmul.f32 %v346, %v458
    %v466 = vmul.f32 %v351, %v458
    %v467 = vmul.f32 %v354, %v458
    %v468 = vmul.f32 %v359, %v458
    %v469 = vmul.f32 %v362, %v458
    %v470 = vmul.f32 %v367, %v458
    %v471 = vmul.f32 %v370, %v458
    %v472 = vmul.f32 %v375, %v458
    %v473 = vmul.f32 %v378, %v458
    %v474 = vmul.f32 %v383, %v458
    %v475 = vmul.f32 %v386, %v458
    %v476 = vmul.f32 %v391, %v458
    %v477 = vmul.f32 %v394, %v458
    %v478 = vmul.f32 %v399, %v458
    %v479 = vmul.f32 %v402, %v458
    %v480 = vmul.f32 %v407, %v458
    %v481 = vmul.f32 %v410, %v458
    %v482 = vmul.f32 %v415, %v458
    %v483 = vmul.f32 %v418, %v458
    %v484 = vmul.f32 %v423, %v458
    %v485 = vmul.f32 %v426, %v458
    %v486 = vmul.f32 %v431, %v458
    %v487 = vmul.f32 %v434, %v458
    %v488 = vmul.f32 %v439, %v458
    %v489 = vmul.f32 %v442, %v458
    %v490 = vmul.f32 %v447, %v458
    %v491 = vmul.f32 %v450, %v458
    %v492 = vpack.c.bf16 %v461, %v460
    %v493 = vpack.c.bf16 %v463, %v462
    %v494 = vpack.c.bf16 %v465, %v464
    %v495 = vpack.c.bf16 %v467, %v466
    %v496 = vpack.c.bf16 %v469, %v468
    %v497 = vpack.c.bf16 %v471, %v470
    %v498 = vpack.c.bf16 %v473, %v472
    %v499 = vpack.c.bf16 %v475, %v474
    %v500 = vpack.c.bf16 %v477, %v476
    %v501 = vpack.c.bf16 %v479, %v478
    %v502 = vpack.c.bf16 %v481, %v480
    %v503 = vpack.c.bf16 %v483, %v482
    %v504 = vpack.c.bf16 %v485, %v484
    %v505 = vpack.c.bf16 %v487, %v486
    %v506 = vpack.c.bf16 %v489, %v488
    %v507 = vpack.c.bf16 %v491, %v490
    %v508 = vld [vmem:[%s7] sm:$0xf]
    %v509 = vld [vmem:[%s7 + $0x4] sm:$0xf]
    %v510 = vld [vmem:[%s7 + $0x8] sm:$0xf]
    %v511 = vld [vmem:[%s7 + $0xc] sm:$0xf]
    %v516 = vunpack.c.l.b16 %v508
    %v517 = vunpack.c.l.b16 %v509
    %v518 = vunpack.c.l.b16 %v510
    %v519 = vunpack.c.l.b16 %v511
    %v520 = vpack.c.b16 %v517, %v516
    %v521 = vpack.c.b16 %v519, %v518
    %v525 = vsel %vm243, %v492, 0
    %v528 = vsel %vm243, %v493, 0
    %v531 = vsel %vm243, %v494, 0
    %v534 = vsel %vm243, %v495, 0
    %v537 = vsel %vm243, %v496, 0
    %v540 = vsel %vm243, %v497, 0
    %v543 = vsel %vm243, %v498, 0
    %v546 = vsel %vm243, %v499, 0
    %v549 = vsel %vm243, %v500, 0
    %v552 = vsel %vm243, %v501, 0
    %v555 = vsel %vm243, %v502, 0
    %v558 = vsel %vm243, %v503, 0
    %v561 = vsel %vm243, %v504, 0
    %v564 = vsel %vm243, %v505, 0
    %v567 = vsel %vm243, %v506, 0
    %v570 = vsel %vm243, %v507, 0
    %572 = vmatprep.subr.bf16.mxu0 0
    %573 = vmatpush1.bf16.msra.mxu0 0
    %574 = vmatprep.subr.bf16.mxu0 0
    %575 = vmatpush1.bf16.msra.mxu0 0
    %576 = vmatprep.subr.bf16.mxu0 0
    %577 = vmatpush1.bf16.msra.mxu0 0
    %578 = vmatprep.subr.bf16.mxu0 0
    %579 = vmatpush1.bf16.msra.mxu0 0
    %580 = vmatprep.subr.bf16.mxu0 0
    %581 = vmatpush1.bf16.msra.mxu0 0
    %582 = vmatprep.subr.bf16.mxu0 0
    %583 = vmatpush1.bf16.msra.mxu0 0
    %584 = vmatprep.subr.bf16.mxu0 0
    %585 = vmatpush1.bf16.msra.mxu0 %v521
    %586 = vmatprep.subr.bf16.mxu0 0
    %587 = vmatpush1.bf16.msra.mxu0 %v520
    %588 = vmatprep.subr.bf16.mxu0 0
    %589 = vmatpush2.bf16.msra.mxu0 0
    %590 = vmatprep.subr.bf16.mxu0 0
    %591 = vmatpush2.bf16.msra.mxu0 0
    %592 = vmatprep.subr.bf16.mxu0 0
    %593 = vmatpush2.bf16.msra.mxu0 0
    %594 = vmatprep.subr.bf16.mxu0 0
    %595 = vmatpush2.bf16.msra.mxu0 0
    %596 = vmatprep.subr.bf16.mxu0 0
    %597 = vmatpush2.bf16.msra.mxu0 0
    %598 = vmatprep.subr.bf16.mxu0 0
    %599 = vmatpush2.bf16.msra.mxu0 0
    %600 = vmatprep.subr.bf16.mxu0 0
    %601 = vmatpush2.bf16.msra.mxu0 0
    %602 = vmatprep.subr.bf16.mxu0 0
    %603 = vmatpush2.bf16.msra.mxu0 0
    %604 = vmatprep.mubr.bf16.mxu0 0
    %605 = vmatmul.mubr.bf16.gmra.mxu0 %v525
    %v606 = vpop.f32.mrf.mxu0
    %v607 = vadd.f32 0.0, %v606
    %v608 = vpop.f32.mrf.mxu0
    %v609 = vpop.f32.mrf.mxu0
    %v610 = vadd.f32 0.0, %v609
    %v611 = vpop.f32.mrf.mxu0
    %612 = vmatprep.mubr.bf16.mxu0 0
    %613 = vmatmul.mubr.bf16.gmra.mxu0 %v528
    %v614 = vpop.f32.mrf.mxu0
    %v615 = vadd.f32 0.0, %v614
    %v616 = vpop.f32.mrf.mxu0
    %v617 = vpop.f32.mrf.mxu0
    %v618 = vadd.f32 0.0, %v617
    %v619 = vpop.f32.mrf.mxu0
    %620 = vmatprep.mubr.bf16.mxu0 0
    %621 = vmatmul.mubr.bf16.gmra.mxu0 %v531
    %v622 = vpop.f32.mrf.mxu0
    %v623 = vadd.f32 0.0, %v622
    %v624 = vpop.f32.mrf.mxu0
    %v625 = vpop.f32.mrf.mxu0
    %v626 = vadd.f32 0.0, %v625
    %v627 = vpop.f32.mrf.mxu0
    %628 = vmatprep.mubr.bf16.mxu0 0
    %629 = vmatmul.mubr.bf16.gmra.mxu0 %v534
    %v630 = vpop.f32.mrf.mxu0
    %v631 = vadd.f32 0.0, %v630
    %v632 = vpop.f32.mrf.mxu0
    %v633 = vpop.f32.mrf.mxu0
    %v634 = vadd.f32 0.0, %v633
    %v635 = vpop.f32.mrf.mxu0
    %636 = vmatprep.mubr.bf16.mxu0 0
    %637 = vmatmul.mubr.bf16.gmra.mxu0 %v537
    %v638 = vpop.f32.mrf.mxu0
    %v639 = vadd.f32 0.0, %v638
    %v640 = vpop.f32.mrf.mxu0
    %v641 = vpop.f32.mrf.mxu0
    %v642 = vadd.f32 0.0, %v641
    %v643 = vpop.f32.mrf.mxu0
    %644 = vmatprep.mubr.bf16.mxu0 0
    %645 = vmatmul.mubr.bf16.gmra.mxu0 %v540
    %v646 = vpop.f32.mrf.mxu0
    %v647 = vadd.f32 0.0, %v646
    %v648 = vpop.f32.mrf.mxu0
    %v649 = vpop.f32.mrf.mxu0
    %v650 = vadd.f32 0.0, %v649
    %v651 = vpop.f32.mrf.mxu0
    %652 = vmatprep.mubr.bf16.mxu0 0
    %653 = vmatmul.mubr.bf16.gmra.mxu0 %v543
    %v654 = vpop.f32.mrf.mxu0
    %v655 = vadd.f32 0.0, %v654
    %v656 = vpop.f32.mrf.mxu0
    %v657 = vpop.f32.mrf.mxu0
    %v658 = vadd.f32 0.0, %v657
    %v659 = vpop.f32.mrf.mxu0
    %660 = vmatprep.mubr.bf16.mxu0 0
    %661 = vmatmul.mubr.bf16.gmra.mxu0 %v546
    %v662 = vpop.f32.mrf.mxu0
    %v663 = vadd.f32 0.0, %v662
    %v664 = vpop.f32.mrf.mxu0
    %v665 = vpop.f32.mrf.mxu0
    %v666 = vadd.f32 0.0, %v665
    %v667 = vpop.f32.mrf.mxu0
    %668 = vmatprep.mubr.bf16.mxu0 0
    %669 = vmatmul.mubr.bf16.gmra.mxu0 %v549
    %v670 = vpop.f32.mrf.mxu0
    %v671 = vadd.f32 0.0, %v670
    %v672 = vpop.f32.mrf.mxu0
    %v673 = vpop.f32.mrf.mxu0
    %v674 = vadd.f32 0.0, %v673
    %v675 = vpop.f32.mrf.mxu0
    %676 = vmatprep.mubr.bf16.mxu0 0
    %677 = vmatmul.mubr.bf16.gmra.mxu0 %v552
    %v678 = vpop.f32.mrf.mxu0
    %v679 = vadd.f32 0.0, %v678
    %v680 = vpop.f32.mrf.mxu0
    %v681 = vpop.f32.mrf.mxu0
    %v682 = vadd.f32 0.0, %v681
    %v683 = vpop.f32.mrf.mxu0
    %684 = vmatprep.mubr.bf16.mxu0 0
    %685 = vmatmul.mubr.bf16.gmra.mxu0 %v555
    %v686 = vpop.f32.mrf.mxu0
    %v687 = vadd.f32 0.0, %v686
    %v688 = vpop.f32.mrf.mxu0
    %v689 = vpop.f32.mrf.mxu0
    %v690 = vadd.f32 0.0, %v689
    %v691 = vpop.f32.mrf.mxu0
    %692 = vmatprep.mubr.bf16.mxu0 0
    %693 = vmatmul.mubr.bf16.gmra.mxu0 %v558
    %v694 = vpop.f32.mrf.mxu0
    %v695 = vadd.f32 0.0, %v694
    %v696 = vpop.f32.mrf.mxu0
    %v697 = vpop.f32.mrf.mxu0
    %v698 = vadd.f32 0.0, %v697
    %v699 = vpop.f32.mrf.mxu0
    %700 = vmatprep.mubr.bf16.mxu0 0
    %701 = vmatmul.mubr.bf16.gmra.mxu0 %v561
    %v702 = vpop.f32.mrf.mxu0
    %v703 = vadd.f32 0.0, %v702
    %v704 = vpop.f32.mrf.mxu0
    %v705 = vpop.f32.mrf.mxu0
    %v706 = vadd.f32 0.0, %v705
    %v707 = vpop.f32.mrf.mxu0
    %708 = vmatprep.mubr.bf16.mxu0 0
    %709 = vmatmul.mubr.bf16.gmra.mxu0 %v564
    %v710 = vpop.f32.mrf.mxu0
    %v711 = vadd.f32 0.0, %v710
    %v712 = vpop.f32.mrf.mxu0
    %v713 = vpop.f32.mrf.mxu0
    %v714 = vadd.f32 0.0, %v713
    %v715 = vpop.f32.mrf.mxu0
    %716 = vmatprep.mubr.bf16.mxu0 0
    %717 = vmatmul.mubr.bf16.gmra.mxu0 %v567
    %v718 = vpop.f32.mrf.mxu0
    %v719 = vadd.f32 0.0, %v718
    %v720 = vpop.f32.mrf.mxu0
    %v721 = vpop.f32.mrf.mxu0
    %v722 = vadd.f32 0.0, %v721
    %v723 = vpop.f32.mrf.mxu0
    %724 = vmatprep.mubr.bf16.mxu0 0
    %725 = vmatmul.mubr.bf16.gmra.mxu0 %v570
    %v726 = vpop.f32.mrf.mxu0
    %v727 = vadd.f32 0.0, %v726
    %v728 = vpop.f32.mrf.mxu0
    %v729 = vpop.f32.mrf.mxu0
    %v730 = vadd.f32 0.0, %v729
    %v731 = vpop.f32.mrf.mxu0
    %732 = vdwg.mxu0
    %v733 = vld [vmem:[%s3] sm:$0x1]
    %vm734 = vcmask 31744
    %v735 = vsel %vm734, %v607, -inf
    %v736 = vsel %vm734, %v610, -inf
    %v737 = vmax.f32 %v735, %v736
    %v738 = vrot.slane %v737, 4
    %v739 = vmax.f32 %v737, %v738
    %v740 = vrot.slane %v739, 2
    %v741 = vmax.f32 %v739, %v740
    %v742 = vrot.slane %v741, 1
    %v743 = vmax.f32 %v741, %v742
    %v744 = vsel %vm734, %v615, -inf
    %v745 = vsel %vm734, %v618, -inf
    %v746 = vmax.f32 %v744, %v745
    %v747 = vrot.slane %v746, 4
    %v748 = vmax.f32 %v746, %v747
    %v749 = vrot.slane %v748, 2
    %v750 = vmax.f32 %v748, %v749
    %v751 = vrot.slane %v750, 1
    %v752 = vmax.f32 %v750, %v751
    %v753 = vsel %vm734, %v623, -inf
    %v754 = vsel %vm734, %v626, -inf
    %v755 = vmax.f32 %v753, %v754
    %v756 = vrot.slane %v755, 4
    %v757 = vmax.f32 %v755, %v756
    %v758 = vrot.slane %v757, 2
    %v759 = vmax.f32 %v757, %v758
    %v760 = vrot.slane %v759, 1
    %v761 = vmax.f32 %v759, %v760
    %v762 = vsel %vm734, %v631, -inf
    %v763 = vsel %vm734, %v634, -inf
    %v764 = vmax.f32 %v762, %v763
    %v765 = vrot.slane %v764, 4
    %v766 = vmax.f32 %v764, %v765
    %v767 = vrot.slane %v766, 2
    %v768 = vmax.f32 %v766, %v767
    %v769 = vrot.slane %v768, 1
    %v770 = vmax.f32 %v768, %v769
    %v771 = vsel %vm734, %v639, -inf
    %v772 = vsel %vm734, %v642, -inf
    %v773 = vmax.f32 %v771, %v772
    %v774 = vrot.slane %v773, 4
    %v775 = vmax.f32 %v773, %v774
    %v776 = vrot.slane %v775, 2
    %v777 = vmax.f32 %v775, %v776
    %v778 = vrot.slane %v777, 1
    %v779 = vmax.f32 %v777, %v778
    %v780 = vsel %vm734, %v647, -inf
    %v781 = vsel %vm734, %v650, -inf
    %v782 = vmax.f32 %v780, %v781
    %v783 = vrot.slane %v782, 4
    %v784 = vmax.f32 %v782, %v783
    %v785 = vrot.slane %v784, 2
    %v786 = vmax.f32 %v784, %v785
    %v787 = vrot.slane %v786, 1
    %v788 = vmax.f32 %v786, %v787
    %v789 = vsel %vm734, %v655, -inf
    %v790 = vsel %vm734, %v658, -inf
    %v791 = vmax.f32 %v789, %v790
    %v792 = vrot.slane %v791, 4
    %v793 = vmax.f32 %v791, %v792
    %v794 = vrot.slane %v793, 2
    %v795 = vmax.f32 %v793, %v794
    %v796 = vrot.slane %v795, 1
    %v797 = vmax.f32 %v795, %v796
    %v798 = vsel %vm734, %v663, -inf
    %v799 = vsel %vm734, %v666, -inf
    %v800 = vmax.f32 %v798, %v799
    %v801 = vrot.slane %v800, 4
    %v802 = vmax.f32 %v800, %v801
    %v803 = vrot.slane %v802, 2
    %v804 = vmax.f32 %v802, %v803
    %v805 = vrot.slane %v804, 1
    %v806 = vmax.f32 %v804, %v805
    %v807 = vsel %vm734, %v671, -inf
    %v808 = vsel %vm734, %v674, -inf
    %v809 = vmax.f32 %v807, %v808
    %v810 = vrot.slane %v809, 4
    %v811 = vmax.f32 %v809, %v810
    %v812 = vrot.slane %v811, 2
    %v813 = vmax.f32 %v811, %v812
    %v814 = vrot.slane %v813, 1
    %v815 = vmax.f32 %v813, %v814
    %v816 = vsel %vm734, %v679, -inf
    %v817 = vsel %vm734, %v682, -inf
    %v818 = vmax.f32 %v816, %v817
    %v819 = vrot.slane %v818, 4
    %v820 = vmax.f32 %v818, %v819
    %v821 = vrot.slane %v820, 2
    %v822 = vmax.f32 %v820, %v821
    %v823 = vrot.slane %v822, 1
    %v824 = vmax.f32 %v822, %v823
    %v825 = vsel %vm734, %v687, -inf
    %v826 = vsel %vm734, %v690, -inf
    %v827 = vmax.f32 %v825, %v826
    %v828 = vrot.slane %v827, 4
    %v829 = vmax.f32 %v827, %v828
    %v830 = vrot.slane %v829, 2
    %v831 = vmax.f32 %v829, %v830
    %v832 = vrot.slane %v831, 1
    %v833 = vmax.f32 %v831, %v832
    %v834 = vsel %vm734, %v695, -inf
    %v835 = vsel %vm734, %v698, -inf
    %v836 = vmax.f32 %v834, %v835
    %v837 = vrot.slane %v836, 4
    %v838 = vmax.f32 %v836, %v837
    %v839 = vrot.slane %v838, 2
    %v840 = vmax.f32 %v838, %v839
    %v841 = vrot.slane %v840, 1
    %v842 = vmax.f32 %v840, %v841
    %v843 = vsel %vm734, %v703, -inf
    %v844 = vsel %vm734, %v706, -inf
    %v845 = vmax.f32 %v843, %v844
    %v846 = vrot.slane %v845, 4
    %v847 = vmax.f32 %v845, %v846
    %v848 = vrot.slane %v847, 2
    %v849 = vmax.f32 %v847, %v848
    %v850 = vrot.slane %v849, 1
    %v851 = vmax.f32 %v849, %v850
    %v852 = vsel %vm734, %v711, -inf
    %v853 = vsel %vm734, %v714, -inf
    %v854 = vmax.f32 %v852, %v853
    %v855 = vrot.slane %v854, 4
    %v856 = vmax.f32 %v854, %v855
    %v857 = vrot.slane %v856, 2
    %v858 = vmax.f32 %v856, %v857
    %v859 = vrot.slane %v858, 1
    %v860 = vmax.f32 %v858, %v859
    %v861 = vsel %vm734, %v719, -inf
    %v862 = vsel %vm734, %v722, -inf
    %v863 = vmax.f32 %v861, %v862
    %v864 = vrot.slane %v863, 4
    %v865 = vmax.f32 %v863, %v864
    %v866 = vrot.slane %v865, 2
    %v867 = vmax.f32 %v865, %v866
    %v868 = vrot.slane %v867, 1
    %v869 = vmax.f32 %v867, %v868
    %v870 = vsel %vm734, %v727, -inf
    %v871 = vsel %vm734, %v730, -inf
    %v872 = vmax.f32 %v870, %v871
    %v873 = vrot.slane %v872, 4
    %v874 = vmax.f32 %v872, %v873
    %v875 = vrot.slane %v874, 2
    %v876 = vmax.f32 %v874, %v875
    %v877 = vrot.slane %v876, 1
    %v878 = vmax.f32 %v876, %v877
    %v879 = vmax.f32 %v743, %v733
    %v880 = vmax.f32 %v752, %v733
    %v881 = vmax.f32 %v761, %v733
    %v882 = vmax.f32 %v770, %v733
    %v883 = vmax.f32 %v779, %v733
    %v884 = vmax.f32 %v788, %v733
    %v885 = vmax.f32 %v797, %v733
    %v886 = vmax.f32 %v806, %v733
    %v887 = vmax.f32 %v815, %v733
    %v888 = vmax.f32 %v824, %v733
    %v889 = vmax.f32 %v833, %v733
    %v890 = vmax.f32 %v842, %v733
    %v891 = vmax.f32 %v851, %v733
    %v892 = vmax.f32 %v860, %v733
    %v893 = vmax.f32 %v869, %v733
    %v894 = vmax.f32 %v878, %v733
    %v895 = vsub.f32 %v733, %v879
    %v896 = vsub.f32 %v733, %v880
    %v897 = vsub.f32 %v733, %v881
    %v898 = vsub.f32 %v733, %v882
    %v899 = vsub.f32 %v733, %v883
    %v900 = vsub.f32 %v733, %v884
    %v901 = vsub.f32 %v733, %v885
    %v902 = vsub.f32 %v733, %v886
    %v903 = vsub.f32 %v733, %v887
    %v904 = vsub.f32 %v733, %v888
    %v905 = vsub.f32 %v733, %v889
    %v906 = vsub.f32 %v733, %v890
    %v907 = vsub.f32 %v733, %v891
    %v908 = vsub.f32 %v733, %v892
    %v909 = vsub.f32 %v733, %v893
    %v910 = vsub.f32 %v733, %v894
    %v911 = vmul.f32 %v895, 1.442695
    %v912 = vpow.pop %v911
    %v913 = vmul.f32 %v896, 1.442695
    %v914 = vpow.pop %v913
    %v915 = vmul.f32 %v897, 1.442695
    %v916 = vpow.pop %v915
    %v917 = vmul.f32 %v898, 1.442695
    %v918 = vpow.pop %v917
    %v919 = vmul.f32 %v899, 1.442695
    %v920 = vpow.pop %v919
    %v921 = vmul.f32 %v900, 1.442695
    %v922 = vpow.pop %v921
    %v923 = vmul.f32 %v901, 1.442695
    %v924 = vpow.pop %v923
    %v925 = vmul.f32 %v902, 1.442695
    %v926 = vpow.pop %v925
    %v927 = vmul.f32 %v903, 1.442695
    %v928 = vpow.pop %v927
    %v929 = vmul.f32 %v904, 1.442695
    %v930 = vpow.pop %v929
    %v931 = vmul.f32 %v905, 1.442695
    %v932 = vpow.pop %v931
    %v933 = vmul.f32 %v906, 1.442695
    %v934 = vpow.pop %v933
    %v935 = vmul.f32 %v907, 1.442695
    %v936 = vpow.pop %v935
    %v937 = vmul.f32 %v908, 1.442695
    %v938 = vpow.pop %v937
    %v939 = vmul.f32 %v909, 1.442695
    %v940 = vpow.pop %v939
    %v941 = vmul.f32 %v910, 1.442695
    %v942 = vpow.pop %v941
    %v943 = vlaneseq
    %v944 = vshrl.u32 %v943, 7
    %v945 = vsub.s32 0, %v944
    %v946 = vrot.slane %v879, %v945
    %v947 = vlaneseq
    %v948 = vshrl.u32 %v947, 7
    %v949 = vsub.s32 0, %v948
    %v950 = vrot.slane %v880, %v949
    %v951 = vlaneseq
    %v952 = vshrl.u32 %v951, 7
    %v953 = vsub.s32 0, %v952
    %v954 = vrot.slane %v881, %v953
    %v955 = vlaneseq
    %v956 = vshrl.u32 %v955, 7
    %v957 = vsub.s32 0, %v956
    %v958 = vrot.slane %v882, %v957
    %v959 = vlaneseq
    %v960 = vshrl.u32 %v959, 7
    %v961 = vsub.s32 0, %v960
    %v962 = vrot.slane %v883, %v961
    %v963 = vlaneseq
    %v964 = vshrl.u32 %v963, 7
    %v965 = vsub.s32 0, %v964
    %v966 = vrot.slane %v884, %v965
    %v967 = vlaneseq
    %v968 = vshrl.u32 %v967, 7
    %v969 = vsub.s32 0, %v968
    %v970 = vrot.slane %v885, %v969
    %v971 = vlaneseq
    %v972 = vshrl.u32 %v971, 7
    %v973 = vsub.s32 0, %v972
    %v974 = vrot.slane %v886, %v973
    %v975 = vlaneseq
    %v976 = vshrl.u32 %v975, 7
    %v977 = vsub.s32 0, %v976
    %v978 = vrot.slane %v887, %v977
    %v979 = vlaneseq
    %v980 = vshrl.u32 %v979, 7
    %v981 = vsub.s32 0, %v980
    %v982 = vrot.slane %v888, %v981
    %v983 = vlaneseq
    %v984 = vshrl.u32 %v983, 7
    %v985 = vsub.s32 0, %v984
    %v986 = vrot.slane %v889, %v985
    %v987 = vlaneseq
    %v988 = vshrl.u32 %v987, 7
    %v989 = vsub.s32 0, %v988
    %v990 = vrot.slane %v890, %v989
    %v991 = vlaneseq
    %v992 = vshrl.u32 %v991, 7
    %v993 = vsub.s32 0, %v992
    %v994 = vrot.slane %v891, %v993
    %v995 = vlaneseq
    %v996 = vshrl.u32 %v995, 7
    %v997 = vsub.s32 0, %v996
    %v998 = vrot.slane %v892, %v997
    %v999 = vlaneseq
    %v1000 = vshrl.u32 %v999, 7
    %v1001 = vsub.s32 0, %v1000
    %v1002 = vrot.slane %v893, %v1001
    %v1003 = vlaneseq
    %v1004 = vshrl.u32 %v1003, 7
    %v1005 = vsub.s32 0, %v1004
    %v1006 = vrot.slane %v894, %v1005
    %v1007 = vsub.f32 %v607, %v946
    %v1008 = vsub.f32 %v610, %v946
    %v1009 = vsub.f32 %v615, %v950
    %v1010 = vsub.f32 %v618, %v950
    %v1011 = vsub.f32 %v623, %v954
    %v1012 = vsub.f32 %v626, %v954
    %v1013 = vsub.f32 %v631, %v958
    %v1014 = vsub.f32 %v634, %v958
    %v1015 = vsub.f32 %v639, %v962
    %v1016 = vsub.f32 %v642, %v962
    %v1017 = vsub.f32 %v647, %v966
    %v1018 = vsub.f32 %v650, %v966
    %v1019 = vsub.f32 %v655, %v970
    %v1020 = vsub.f32 %v658, %v970
    %v1021 = vsub.f32 %v663, %v974
    %v1022 = vsub.f32 %v666, %v974
    %v1023 = vsub.f32 %v671, %v978
    %v1024 = vsub.f32 %v674, %v978
    %v1025 = vsub.f32 %v679, %v982
    %v1026 = vsub.f32 %v682, %v982
    %v1027 = vsub.f32 %v687, %v986
    %v1028 = vsub.f32 %v690, %v986
    %v1029 = vsub.f32 %v695, %v990
    %v1030 = vsub.f32 %v698, %v990
    %v1031 = vsub.f32 %v703, %v994
    %v1032 = vsub.f32 %v706, %v994
    %v1033 = vsub.f32 %v711, %v998
    %v1034 = vsub.f32 %v714, %v998
    %v1035 = vsub.f32 %v719, %v1002
    %v1036 = vsub.f32 %v722, %v1002
    %v1037 = vsub.f32 %v727, %v1006
    %v1038 = vsub.f32 %v730, %v1006
    %v1039 = vmul.f32 %v1007, 1.442695
    %v1040 = vpow.pop %v1039
    %v1041 = vmul.f32 %v1008, 1.442695
    %v1042 = vpow.pop %v1041
    %v1043 = vmul.f32 %v1009, 1.442695
    %v1044 = vpow.pop %v1043
    %v1045 = vmul.f32 %v1010, 1.442695
    %v1046 = vpow.pop %v1045
    %v1047 = vmul.f32 %v1011, 1.442695
    %v1048 = vpow.pop %v1047
    %v1049 = vmul.f32 %v1012, 1.442695
    %v1050 = vpow.pop %v1049
    %v1051 = vmul.f32 %v1013, 1.442695
    %v1052 = vpow.pop %v1051
    %v1053 = vmul.f32 %v1014, 1.442695
    %v1054 = vpow.pop %v1053
    %v1055 = vmul.f32 %v1015, 1.442695
    %v1056 = vpow.pop %v1055
    %v1057 = vmul.f32 %v1016, 1.442695
    %v1058 = vpow.pop %v1057
    %v1059 = vmul.f32 %v1017, 1.442695
    %v1060 = vpow.pop %v1059
    %v1061 = vmul.f32 %v1018, 1.442695
    %v1062 = vpow.pop %v1061
    %v1063 = vmul.f32 %v1019, 1.442695
    %v1064 = vpow.pop %v1063
    %v1065 = vmul.f32 %v1020, 1.442695
    %v1066 = vpow.pop %v1065
    %v1067 = vmul.f32 %v1021, 1.442695
    %v1068 = vpow.pop %v1067
    %v1069 = vmul.f32 %v1022, 1.442695
    %v1070 = vpow.pop %v1069
    %v1071 = vmul.f32 %v1023, 1.442695
    %v1072 = vpow.pop %v1071
    %v1073 = vmul.f32 %v1024, 1.442695
    %v1074 = vpow.pop %v1073
    %v1075 = vmul.f32 %v1025, 1.442695
    %v1076 = vpow.pop %v1075
    %v1077 = vmul.f32 %v1026, 1.442695
    %v1078 = vpow.pop %v1077
    %v1079 = vmul.f32 %v1027, 1.442695
    %v1080 = vpow.pop %v1079
    %v1081 = vmul.f32 %v1028, 1.442695
    %v1082 = vpow.pop %v1081
    %v1083 = vmul.f32 %v1029, 1.442695
    %v1084 = vpow.pop %v1083
    %v1085 = vmul.f32 %v1030, 1.442695
    %v1086 = vpow.pop %v1085
    %v1087 = vmul.f32 %v1031, 1.442695
    %v1088 = vpow.pop %v1087
    %v1089 = vmul.f32 %v1032, 1.442695
    %v1090 = vpow.pop %v1089
    %v1091 = vmul.f32 %v1033, 1.442695
    %v1092 = vpow.pop %v1091
    %v1093 = vmul.f32 %v1034, 1.442695
    %v1094 = vpow.pop %v1093
    %v1095 = vmul.f32 %v1035, 1.442695
    %v1096 = vpow.pop %v1095
    %v1097 = vmul.f32 %v1036, 1.442695
    %v1098 = vpow.pop %v1097
    %v1099 = vmul.f32 %v1037, 1.442695
    %v1100 = vpow.pop %v1099
    %v1101 = vmul.f32 %v1038, 1.442695
    %v1102 = vpow.pop %v1101
    %v1103 = vsel %vm734, %v1040, 0.0
    %v1104 = vsel %vm734, %v1042, 0.0
    %v1105 = vadd.f32 %v1103, %v1104
    %v1106 = vrot.slane %v1105, 4
    %v1107 = vadd.f32 %v1105, %v1106
    %v1108 = vrot.slane %v1107, 2
    %v1109 = vadd.f32 %v1107, %v1108
    %v1110 = vrot.slane %v1109, 1
    %v1111 = vadd.f32 %v1109, %v1110
    %v1112 = vsel %vm734, %v1044, 0.0
    %v1113 = vsel %vm734, %v1046, 0.0
    %v1114 = vadd.f32 %v1112, %v1113
    %v1115 = vrot.slane %v1114, 4
    %v1116 = vadd.f32 %v1114, %v1115
    %v1117 = vrot.slane %v1116, 2
    %v1118 = vadd.f32 %v1116, %v1117
    %v1119 = vrot.slane %v1118, 1
    %v1120 = vadd.f32 %v1118, %v1119
    %v1121 = vsel %vm734, %v1048, 0.0
    %v1122 = vsel %vm734, %v1050, 0.0
    %v1123 = vadd.f32 %v1121, %v1122
    %v1124 = vrot.slane %v1123, 4
    %v1125 = vadd.f32 %v1123, %v1124
    %v1126 = vrot.slane %v1125, 2
    %v1127 = vadd.f32 %v1125, %v1126
    %v1128 = vrot.slane %v1127, 1
    %v1129 = vadd.f32 %v1127, %v1128
    %v1130 = vsel %vm734, %v1052, 0.0
    %v1131 = vsel %vm734, %v1054, 0.0
    %v1132 = vadd.f32 %v1130, %v1131
    %v1133 = vrot.slane %v1132, 4
    %v1134 = vadd.f32 %v1132, %v1133
    %v1135 = vrot.slane %v1134, 2
    %v1136 = vadd.f32 %v1134, %v1135
    %v1137 = vrot.slane %v1136, 1
    %v1138 = vadd.f32 %v1136, %v1137
    %v1139 = vsel %vm734, %v1056, 0.0
    %v1140 = vsel %vm734, %v1058, 0.0
    %v1141 = vadd.f32 %v1139, %v1140
    %v1142 = vrot.slane %v1141, 4
    %v1143 = vadd.f32 %v1141, %v1142
    %v1144 = vrot.slane %v1143, 2
    %v1145 = vadd.f32 %v1143, %v1144
    %v1146 = vrot.slane %v1145, 1
    %v1147 = vadd.f32 %v1145, %v1146
    %v1148 = vsel %vm734, %v1060, 0.0
    %v1149 = vsel %vm734, %v1062, 0.0
    %v1150 = vadd.f32 %v1148, %v1149
    %v1151 = vrot.slane %v1150, 4
    %v1152 = vadd.f32 %v1150, %v1151
    %v1153 = vrot.slane %v1152, 2
    %v1154 = vadd.f32 %v1152, %v1153
    %v1155 = vrot.slane %v1154, 1
    %v1156 = vadd.f32 %v1154, %v1155
    %v1157 = vsel %vm734, %v1064, 0.0
    %v1158 = vsel %vm734, %v1066, 0.0
    %v1159 = vadd.f32 %v1157, %v1158
    %v1160 = vrot.slane %v1159, 4
    %v1161 = vadd.f32 %v1159, %v1160
    %v1162 = vrot.slane %v1161, 2
    %v1163 = vadd.f32 %v1161, %v1162
    %v1164 = vrot.slane %v1163, 1
    %v1165 = vadd.f32 %v1163, %v1164
    %v1166 = vsel %vm734, %v1068, 0.0
    %v1167 = vsel %vm734, %v1070, 0.0
    %v1168 = vadd.f32 %v1166, %v1167
    %v1169 = vrot.slane %v1168, 4
    %v1170 = vadd.f32 %v1168, %v1169
    %v1171 = vrot.slane %v1170, 2
    %v1172 = vadd.f32 %v1170, %v1171
    %v1173 = vrot.slane %v1172, 1
    %v1174 = vadd.f32 %v1172, %v1173
    %v1175 = vsel %vm734, %v1072, 0.0
    %v1176 = vsel %vm734, %v1074, 0.0
    %v1177 = vadd.f32 %v1175, %v1176
    %v1178 = vrot.slane %v1177, 4
    %v1179 = vadd.f32 %v1177, %v1178
    %v1180 = vrot.slane %v1179, 2
    %v1181 = vadd.f32 %v1179, %v1180
    %v1182 = vrot.slane %v1181, 1
    %v1183 = vadd.f32 %v1181, %v1182
    %v1184 = vsel %vm734, %v1076, 0.0
    %v1185 = vsel %vm734, %v1078, 0.0
    %v1186 = vadd.f32 %v1184, %v1185
    %v1187 = vrot.slane %v1186, 4
    %v1188 = vadd.f32 %v1186, %v1187
    %v1189 = vrot.slane %v1188, 2
    %v1190 = vadd.f32 %v1188, %v1189
    %v1191 = vrot.slane %v1190, 1
    %v1192 = vadd.f32 %v1190, %v1191
    %v1193 = vsel %vm734, %v1080, 0.0
    %v1194 = vsel %vm734, %v1082, 0.0
    %v1195 = vadd.f32 %v1193, %v1194
    %v1196 = vrot.slane %v1195, 4
    %v1197 = vadd.f32 %v1195, %v1196
    %v1198 = vrot.slane %v1197, 2
    %v1199 = vadd.f32 %v1197, %v1198
    %v1200 = vrot.slane %v1199, 1
    %v1201 = vadd.f32 %v1199, %v1200
    %v1202 = vsel %vm734, %v1084, 0.0
    %v1203 = vsel %vm734, %v1086, 0.0
    %v1204 = vadd.f32 %v1202, %v1203
    %v1205 = vrot.slane %v1204, 4
    %v1206 = vadd.f32 %v1204, %v1205
    %v1207 = vrot.slane %v1206, 2
    %v1208 = vadd.f32 %v1206, %v1207
    %v1209 = vrot.slane %v1208, 1
    %v1210 = vadd.f32 %v1208, %v1209
    %v1211 = vsel %vm734, %v1088, 0.0
    %v1212 = vsel %vm734, %v1090, 0.0
    %v1213 = vadd.f32 %v1211, %v1212
    %v1214 = vrot.slane %v1213, 4
    %v1215 = vadd.f32 %v1213, %v1214
    %v1216 = vrot.slane %v1215, 2
    %v1217 = vadd.f32 %v1215, %v1216
    %v1218 = vrot.slane %v1217, 1
    %v1219 = vadd.f32 %v1217, %v1218
    %v1220 = vsel %vm734, %v1092, 0.0
    %v1221 = vsel %vm734, %v1094, 0.0
    %v1222 = vadd.f32 %v1220, %v1221
    %v1223 = vrot.slane %v1222, 4
    %v1224 = vadd.f32 %v1222, %v1223
    %v1225 = vrot.slane %v1224, 2
    %v1226 = vadd.f32 %v1224, %v1225
    %v1227 = vrot.slane %v1226, 1
    %v1228 = vadd.f32 %v1226, %v1227
    %v1229 = vsel %vm734, %v1096, 0.0
    %v1230 = vsel %vm734, %v1098, 0.0
    %v1231 = vadd.f32 %v1229, %v1230
    %v1232 = vrot.slane %v1231, 4
    %v1233 = vadd.f32 %v1231, %v1232
    %v1234 = vrot.slane %v1233, 2
    %v1235 = vadd.f32 %v1233, %v1234
    %v1236 = vrot.slane %v1235, 1
    %v1237 = vadd.f32 %v1235, %v1236
    %v1238 = vsel %vm734, %v1100, 0.0
    %v1239 = vsel %vm734, %v1102, 0.0
    %v1240 = vadd.f32 %v1238, %v1239
    %v1241 = vrot.slane %v1240, 4
    %v1242 = vadd.f32 %v1240, %v1241
    %v1243 = vrot.slane %v1242, 2
    %v1244 = vadd.f32 %v1242, %v1243
    %v1245 = vrot.slane %v1244, 1
    %v1246 = vadd.f32 %v1244, %v1245
    %v1247 = vadd.f32 %v912, %v1111
    %v1248 = vadd.f32 %v914, %v1120
    %v1249 = vadd.f32 %v916, %v1129
    %v1250 = vadd.f32 %v918, %v1138
    %v1251 = vadd.f32 %v920, %v1147
    %v1252 = vadd.f32 %v922, %v1156
    %v1253 = vadd.f32 %v924, %v1165
    %v1254 = vadd.f32 %v926, %v1174
    %v1255 = vadd.f32 %v928, %v1183
    %v1256 = vadd.f32 %v930, %v1192
    %v1257 = vadd.f32 %v932, %v1201
    %v1258 = vadd.f32 %v934, %v1210
    %v1259 = vadd.f32 %v936, %v1219
    %v1260 = vadd.f32 %v938, %v1228
    %v1261 = vadd.f32 %v940, %v1237
    %v1262 = vadd.f32 %v942, %v1246
    %v1263 = vrcp.pop %v1247
    %v1264 = vrcp.pop %v1248
    %v1265 = vrcp.pop %v1249
    %v1266 = vrcp.pop %v1250
    %v1267 = vrcp.pop %v1251
    %v1268 = vrcp.pop %v1252
    %v1269 = vrcp.pop %v1253
    %v1270 = vrcp.pop %v1254
    %v1271 = vrcp.pop %v1255
    %v1272 = vrcp.pop %v1256
    %v1273 = vrcp.pop %v1257
    %v1274 = vrcp.pop %v1258
    %v1275 = vrcp.pop %v1259
    %v1276 = vrcp.pop %v1260
    %v1277 = vrcp.pop %v1261
    %v1278 = vrcp.pop %v1262
    %v1279 = vmul.f32 %v912, %v1263
    %v1280 = vmul.f32 %v914, %v1264
    %v1281 = vmul.f32 %v916, %v1265
    %v1282 = vmul.f32 %v918, %v1266
    %v1283 = vmul.f32 %v920, %v1267
    %v1284 = vmul.f32 %v922, %v1268
    %v1285 = vmul.f32 %v924, %v1269
    %v1286 = vmul.f32 %v926, %v1270
    %v1287 = vmul.f32 %v928, %v1271
    %v1288 = vmul.f32 %v930, %v1272
    %v1289 = vmul.f32 %v932, %v1273
    %v1290 = vmul.f32 %v934, %v1274
    %v1291 = vmul.f32 %v936, %v1275
    %v1292 = vmul.f32 %v938, %v1276
    %v1293 = vmul.f32 %v940, %v1277
    %v1294 = vmul.f32 %v942, %v1278
    %v1311 = vlaneseq
    %v1312 = vshrl.u32 %v1311, 7
    %v1313 = vsub.s32 0, %v1312
    %v1314 = vrot.slane %v1263, %v1313
    %v1315 = vlaneseq
    %v1316 = vshrl.u32 %v1315, 7
    %v1317 = vsub.s32 0, %v1316
    %v1318 = vrot.slane %v1264, %v1317
    %v1319 = vlaneseq
    %v1320 = vshrl.u32 %v1319, 7
    %v1321 = vsub.s32 0, %v1320
    %v1322 = vrot.slane %v1265, %v1321
    %v1323 = vlaneseq
    %v1324 = vshrl.u32 %v1323, 7
    %v1325 = vsub.s32 0, %v1324
    %v1326 = vrot.slane %v1266, %v1325
    %v1327 = vlaneseq
    %v1328 = vshrl.u32 %v1327, 7
    %v1329 = vsub.s32 0, %v1328
    %v1330 = vrot.slane %v1267, %v1329
    %v1331 = vlaneseq
    %v1332 = vshrl.u32 %v1331, 7
    %v1333 = vsub.s32 0, %v1332
    %v1334 = vrot.slane %v1268, %v1333
    %v1335 = vlaneseq
    %v1336 = vshrl.u32 %v1335, 7
    %v1337 = vsub.s32 0, %v1336
    %v1338 = vrot.slane %v1269, %v1337
    %v1339 = vlaneseq
    %v1340 = vshrl.u32 %v1339, 7
    %v1341 = vsub.s32 0, %v1340
    %v1342 = vrot.slane %v1270, %v1341
    %v1343 = vlaneseq
    %v1344 = vshrl.u32 %v1343, 7
    %v1345 = vsub.s32 0, %v1344
    %v1346 = vrot.slane %v1271, %v1345
    %v1347 = vlaneseq
    %v1348 = vshrl.u32 %v1347, 7
    %v1349 = vsub.s32 0, %v1348
    %v1350 = vrot.slane %v1272, %v1349
    %v1351 = vlaneseq
    %v1352 = vshrl.u32 %v1351, 7
    %v1353 = vsub.s32 0, %v1352
    %v1354 = vrot.slane %v1273, %v1353
    %v1355 = vlaneseq
    %v1356 = vshrl.u32 %v1355, 7
    %v1357 = vsub.s32 0, %v1356
    %v1358 = vrot.slane %v1274, %v1357
    %v1359 = vlaneseq
    %v1360 = vshrl.u32 %v1359, 7
    %v1361 = vsub.s32 0, %v1360
    %v1362 = vrot.slane %v1275, %v1361
    %v1363 = vlaneseq
    %v1364 = vshrl.u32 %v1363, 7
    %v1365 = vsub.s32 0, %v1364
    %v1366 = vrot.slane %v1276, %v1365
    %v1367 = vlaneseq
    %v1368 = vshrl.u32 %v1367, 7
    %v1369 = vsub.s32 0, %v1368
    %v1370 = vrot.slane %v1277, %v1369
    %v1371 = vlaneseq
    %v1372 = vshrl.u32 %v1371, 7
    %v1373 = vsub.s32 0, %v1372
    %v1374 = vrot.slane %v1278, %v1373
    %v1391 = vmul.f32 %v1040, %v1314
    %v1392 = vmul.f32 %v1042, %v1314
    %v1393 = vmul.f32 %v1044, %v1318
    %v1394 = vmul.f32 %v1046, %v1318
    %v1395 = vmul.f32 %v1048, %v1322
    %v1396 = vmul.f32 %v1050, %v1322
    %v1397 = vmul.f32 %v1052, %v1326
    %v1398 = vmul.f32 %v1054, %v1326
    %v1399 = vmul.f32 %v1056, %v1330
    %v1400 = vmul.f32 %v1058, %v1330
    %v1401 = vmul.f32 %v1060, %v1334
    %v1402 = vmul.f32 %v1062, %v1334
    %v1403 = vmul.f32 %v1064, %v1338
    %v1404 = vmul.f32 %v1066, %v1338
    %v1405 = vmul.f32 %v1068, %v1342
    %v1406 = vmul.f32 %v1070, %v1342
    %v1407 = vmul.f32 %v1072, %v1346
    %v1408 = vmul.f32 %v1074, %v1346
    %v1409 = vmul.f32 %v1076, %v1350
    %v1410 = vmul.f32 %v1078, %v1350
    %v1411 = vmul.f32 %v1080, %v1354
    %v1412 = vmul.f32 %v1082, %v1354
    %v1413 = vmul.f32 %v1084, %v1358
    %v1414 = vmul.f32 %v1086, %v1358
    %v1415 = vmul.f32 %v1088, %v1362
    %v1416 = vmul.f32 %v1090, %v1362
    %v1417 = vmul.f32 %v1092, %v1366
    %v1418 = vmul.f32 %v1094, %v1366
    %v1419 = vmul.f32 %v1096, %v1370
    %v1420 = vmul.f32 %v1098, %v1370
    %v1421 = vmul.f32 %v1100, %v1374
    %v1422 = vmul.f32 %v1102, %v1374
    %v1423 = vpack.c.bf16 %v1392, %v1391
    %v1424 = vpack.c.bf16 %v1394, %v1393
    %v1425 = vpack.c.bf16 %v1396, %v1395
    %v1426 = vpack.c.bf16 %v1398, %v1397
    %v1427 = vpack.c.bf16 %v1400, %v1399
    %v1428 = vpack.c.bf16 %v1402, %v1401
    %v1429 = vpack.c.bf16 %v1404, %v1403
    %v1430 = vpack.c.bf16 %v1406, %v1405
    %v1431 = vpack.c.bf16 %v1408, %v1407
    %v1432 = vpack.c.bf16 %v1410, %v1409
    %v1433 = vpack.c.bf16 %v1412, %v1411
    %v1434 = vpack.c.bf16 %v1414, %v1413
    %v1435 = vpack.c.bf16 %v1416, %v1415
    %v1436 = vpack.c.bf16 %v1418, %v1417
    %v1437 = vpack.c.bf16 %v1420, %v1419
    %v1438 = vpack.c.bf16 %v1422, %v1421
    %v1439 = vld [vmem:[%s8] sm:$0x3]
    %v1441 = vsel %vm734, %v1423, 0
    %v1444 = vsel %vm734, %v1424, 0
    %v1447 = vsel %vm734, %v1425, 0
    %v1450 = vsel %vm734, %v1426, 0
    %v1453 = vsel %vm734, %v1427, 0
    %v1456 = vsel %vm734, %v1428, 0
    %v1459 = vsel %vm734, %v1429, 0
    %v1462 = vsel %vm734, %v1430, 0
    %v1465 = vsel %vm734, %v1431, 0
    %v1468 = vsel %vm734, %v1432, 0
    %v1471 = vsel %vm734, %v1433, 0
    %v1474 = vsel %vm734, %v1434, 0
    %v1477 = vsel %vm734, %v1435, 0
    %v1480 = vsel %vm734, %v1436, 0
    %v1483 = vsel %vm734, %v1437, 0
    %v1486 = vsel %vm734, %v1438, 0
    %vm1488 = vcmask 1041408
    %v1490 = vsel %vm1488, %v1439, 0
    %1492 = vmatprep.subr.bf16.mxu0 0
    %1493 = vmatpush1.bf16.msra.mxu0 0
    %1494 = vmatprep.subr.bf16.mxu0 0
    %1495 = vmatpush1.bf16.msra.mxu0 0
    %1496 = vmatprep.subr.bf16.mxu0 0
    %1497 = vmatpush1.bf16.msra.mxu0 0
    %1498 = vmatprep.subr.bf16.mxu0 0
    %1499 = vmatpush1.bf16.msra.mxu0 0
    %1500 = vmatprep.subr.bf16.mxu0 0
    %1501 = vmatpush1.bf16.msra.mxu0 0
    %1502 = vmatprep.subr.bf16.mxu0 0
    %1503 = vmatpush1.bf16.msra.mxu0 0
    %1504 = vmatprep.subr.bf16.mxu0 0
    %1505 = vmatpush1.bf16.msra.mxu0 0
    %1506 = vmatprep.subr.bf16.mxu0 0
    %1507 = vmatpush1.bf16.msra.mxu0 %v1490
    %1508 = vmatprep.subr.bf16.mxu0 0
    %1509 = vmatpush2.bf16.msra.mxu0 0
    %1510 = vmatprep.subr.bf16.mxu0 0
    %1511 = vmatpush2.bf16.msra.mxu0 0
    %1512 = vmatprep.subr.bf16.mxu0 0
    %1513 = vmatpush2.bf16.msra.mxu0 0
    %1514 = vmatprep.subr.bf16.mxu0 0
    %1515 = vmatpush2.bf16.msra.mxu0 0
    %1516 = vmatprep.subr.bf16.mxu0 0
    %1517 = vmatpush2.bf16.msra.mxu0 0
    %1518 = vmatprep.subr.bf16.mxu0 0
    %1519 = vmatpush2.bf16.msra.mxu0 0
    %1520 = vmatprep.subr.bf16.mxu0 0
    %1521 = vmatpush2.bf16.msra.mxu0 0
    %1522 = vmatprep.subr.bf16.mxu0 0
    %1523 = vmatpush2.bf16.msra.mxu0 0
    %1524 = vmatprep.mubr.bf16.mxu0 0
    %1525 = vmatmul.mubr.bf16.gmra.mxu0 %v1441
    %v1526 = vpop.f32.mrf.mxu0
    %v1527 = vadd.f32 0.0, %v1526
    %v1528 = vpop.f32.mrf.mxu0
    %v1529 = vpop.f32.mrf.mxu0
    %v1530 = vadd.f32 0.0, %v1529
    %v1531 = vpop.f32.mrf.mxu0
    %1532 = vmatprep.mubr.bf16.mxu0 0
    %1533 = vmatmul.mubr.bf16.gmra.mxu0 %v1444
    %v1534 = vpop.f32.mrf.mxu0
    %v1535 = vadd.f32 0.0, %v1534
    %v1536 = vpop.f32.mrf.mxu0
    %v1537 = vpop.f32.mrf.mxu0
    %v1538 = vadd.f32 0.0, %v1537
    %v1539 = vpop.f32.mrf.mxu0
    %1540 = vmatprep.mubr.bf16.mxu0 0
    %1541 = vmatmul.mubr.bf16.gmra.mxu0 %v1447
    %v1542 = vpop.f32.mrf.mxu0
    %v1543 = vadd.f32 0.0, %v1542
    %v1544 = vpop.f32.mrf.mxu0
    %v1545 = vpop.f32.mrf.mxu0
    %v1546 = vadd.f32 0.0, %v1545
    %v1547 = vpop.f32.mrf.mxu0
    %1548 = vmatprep.mubr.bf16.mxu0 0
    %1549 = vmatmul.mubr.bf16.gmra.mxu0 %v1450
    %v1550 = vpop.f32.mrf.mxu0
    %v1551 = vadd.f32 0.0, %v1550
    %v1552 = vpop.f32.mrf.mxu0
    %v1553 = vpop.f32.mrf.mxu0
    %v1554 = vadd.f32 0.0, %v1553
    %v1555 = vpop.f32.mrf.mxu0
    %1556 = vmatprep.mubr.bf16.mxu0 0
    %1557 = vmatmul.mubr.bf16.gmra.mxu0 %v1453
    %v1558 = vpop.f32.mrf.mxu0
    %v1559 = vadd.f32 0.0, %v1558
    %v1560 = vpop.f32.mrf.mxu0
    %v1561 = vpop.f32.mrf.mxu0
    %v1562 = vadd.f32 0.0, %v1561
    %v1563 = vpop.f32.mrf.mxu0
    %1564 = vmatprep.mubr.bf16.mxu0 0
    %1565 = vmatmul.mubr.bf16.gmra.mxu0 %v1456
    %v1566 = vpop.f32.mrf.mxu0
    %v1567 = vadd.f32 0.0, %v1566
    %v1568 = vpop.f32.mrf.mxu0
    %v1569 = vpop.f32.mrf.mxu0
    %v1570 = vadd.f32 0.0, %v1569
    %v1571 = vpop.f32.mrf.mxu0
    %1572 = vmatprep.mubr.bf16.mxu0 0
    %1573 = vmatmul.mubr.bf16.gmra.mxu0 %v1459
    %v1574 = vpop.f32.mrf.mxu0
    %v1575 = vadd.f32 0.0, %v1574
    %v1576 = vpop.f32.mrf.mxu0
    %v1577 = vpop.f32.mrf.mxu0
    %v1578 = vadd.f32 0.0, %v1577
    %v1579 = vpop.f32.mrf.mxu0
    %1580 = vmatprep.mubr.bf16.mxu0 0
    %1581 = vmatmul.mubr.bf16.gmra.mxu0 %v1462
    %v1582 = vpop.f32.mrf.mxu0
    %v1583 = vadd.f32 0.0, %v1582
    %v1584 = vpop.f32.mrf.mxu0
    %v1585 = vpop.f32.mrf.mxu0
    %v1586 = vadd.f32 0.0, %v1585
    %v1587 = vpop.f32.mrf.mxu0
    %1588 = vmatprep.mubr.bf16.mxu0 0
    %1589 = vmatmul.mubr.bf16.gmra.mxu0 %v1465
    %v1590 = vpop.f32.mrf.mxu0
    %v1591 = vadd.f32 0.0, %v1590
    %v1592 = vpop.f32.mrf.mxu0
    %v1593 = vpop.f32.mrf.mxu0
    %v1594 = vadd.f32 0.0, %v1593
    %v1595 = vpop.f32.mrf.mxu0
    %1596 = vmatprep.mubr.bf16.mxu0 0
    %1597 = vmatmul.mubr.bf16.gmra.mxu0 %v1468
    %v1598 = vpop.f32.mrf.mxu0
    %v1599 = vadd.f32 0.0, %v1598
    %v1600 = vpop.f32.mrf.mxu0
    %v1601 = vpop.f32.mrf.mxu0
    %v1602 = vadd.f32 0.0, %v1601
    %v1603 = vpop.f32.mrf.mxu0
    %1604 = vmatprep.mubr.bf16.mxu0 0
    %1605 = vmatmul.mubr.bf16.gmra.mxu0 %v1471
    %v1606 = vpop.f32.mrf.mxu0
    %v1607 = vadd.f32 0.0, %v1606
    %v1608 = vpop.f32.mrf.mxu0
    %v1609 = vpop.f32.mrf.mxu0
    %v1610 = vadd.f32 0.0, %v1609
    %v1611 = vpop.f32.mrf.mxu0
    %1612 = vmatprep.mubr.bf16.mxu0 0
    %1613 = vmatmul.mubr.bf16.gmra.mxu0 %v1474
    %v1614 = vpop.f32.mrf.mxu0
    %v1615 = vadd.f32 0.0, %v1614
    %v1616 = vpop.f32.mrf.mxu0
    %v1617 = vpop.f32.mrf.mxu0
    %v1618 = vadd.f32 0.0, %v1617
    %v1619 = vpop.f32.mrf.mxu0
    %1620 = vmatprep.mubr.bf16.mxu0 0
    %1621 = vmatmul.mubr.bf16.gmra.mxu0 %v1477
    %v1622 = vpop.f32.mrf.mxu0
    %v1623 = vadd.f32 0.0, %v1622
    %v1624 = vpop.f32.mrf.mxu0
    %v1625 = vpop.f32.mrf.mxu0
    %v1626 = vadd.f32 0.0, %v1625
    %v1627 = vpop.f32.mrf.mxu0
    %1628 = vmatprep.mubr.bf16.mxu0 0
    %1629 = vmatmul.mubr.bf16.gmra.mxu0 %v1480
    %v1630 = vpop.f32.mrf.mxu0
    %v1631 = vadd.f32 0.0, %v1630
    %v1632 = vpop.f32.mrf.mxu0
    %v1633 = vpop.f32.mrf.mxu0
    %v1634 = vadd.f32 0.0, %v1633
    %v1635 = vpop.f32.mrf.mxu0
    %1636 = vmatprep.mubr.bf16.mxu0 0
    %1637 = vmatmul.mubr.bf16.gmra.mxu0 %v1483
    %v1638 = vpop.f32.mrf.mxu0
    %v1639 = vadd.f32 0.0, %v1638
    %v1640 = vpop.f32.mrf.mxu0
    %v1641 = vpop.f32.mrf.mxu0
    %v1642 = vadd.f32 0.0, %v1641
    %v1643 = vpop.f32.mrf.mxu0
    %1644 = vmatprep.mubr.bf16.mxu0 0
    %1645 = vmatmul.mubr.bf16.gmra.mxu0 %v1486
    %v1646 = vpop.f32.mrf.mxu0
    %v1647 = vadd.f32 0.0, %v1646
    %v1648 = vpop.f32.mrf.mxu0
    %v1649 = vpop.f32.mrf.mxu0
    %v1650 = vadd.f32 0.0, %v1649
    %v1651 = vpop.f32.mrf.mxu0
    %1652 = vdwg.mxu0
    %1685 = vrot.lane.b32.xlu0 %v327, 96
    %v1686 = vpop.permute.xlu0 %1685
    %1687 = vrot.lane.b32.xlu0 %v330, 96
    %v1688 = vpop.permute.xlu0 %1687
    %1689 = vrot.lane.b32.xlu0 %v335, 96
    %v1690 = vpop.permute.xlu0 %1689
    %1691 = vrot.lane.b32.xlu0 %v338, 96
    %v1692 = vpop.permute.xlu0 %1691
    %1693 = vrot.lane.b32.xlu0 %v343, 96
    %v1694 = vpop.permute.xlu0 %1693
    %1695 = vrot.lane.b32.xlu0 %v346, 96
    %v1696 = vpop.permute.xlu0 %1695
    %1697 = vrot.lane.b32.xlu0 %v351, 96
    %v1698 = vpop.permute.xlu0 %1697
    %1699 = vrot.lane.b32.xlu0 %v354, 96
    %v1700 = vpop.permute.xlu0 %1699
    %1701 = vrot.lane.b32.xlu0 %v359, 96
    %v1702 = vpop.permute.xlu0 %1701
    %1703 = vrot.lane.b32.xlu0 %v362, 96
    %v1704 = vpop.permute.xlu0 %1703
    %1705 = vrot.lane.b32.xlu0 %v367, 96
    %v1706 = vpop.permute.xlu0 %1705
    %1707 = vrot.lane.b32.xlu0 %v370, 96
    %v1708 = vpop.permute.xlu0 %1707
    %1709 = vrot.lane.b32.xlu0 %v375, 96
    %v1710 = vpop.permute.xlu0 %1709
    %1711 = vrot.lane.b32.xlu0 %v378, 96
    %v1712 = vpop.permute.xlu0 %1711
    %1713 = vrot.lane.b32.xlu0 %v383, 96
    %v1714 = vpop.permute.xlu0 %1713
    %1715 = vrot.lane.b32.xlu0 %v386, 96
    %v1716 = vpop.permute.xlu0 %1715
    %1717 = vrot.lane.b32.xlu0 %v391, 96
    %v1718 = vpop.permute.xlu0 %1717
    %1719 = vrot.lane.b32.xlu0 %v394, 96
    %v1720 = vpop.permute.xlu0 %1719
    %1721 = vrot.lane.b32.xlu0 %v399, 96
    %v1722 = vpop.permute.xlu0 %1721
    %1723 = vrot.lane.b32.xlu0 %v402, 96
    %v1724 = vpop.permute.xlu0 %1723
    %1725 = vrot.lane.b32.xlu0 %v407, 96
    %v1726 = vpop.permute.xlu0 %1725
    %1727 = vrot.lane.b32.xlu0 %v410, 96
    %v1728 = vpop.permute.xlu0 %1727
    %1729 = vrot.lane.b32.xlu0 %v415, 96
    %v1730 = vpop.permute.xlu0 %1729
    %1731 = vrot.lane.b32.xlu0 %v418, 96
    %v1732 = vpop.permute.xlu0 %1731
    %1733 = vrot.lane.b32.xlu0 %v423, 96
    %v1734 = vpop.permute.xlu0 %1733
    %1735 = vrot.lane.b32.xlu0 %v426, 96
    %v1736 = vpop.permute.xlu0 %1735
    %1737 = vrot.lane.b32.xlu0 %v431, 96
    %v1738 = vpop.permute.xlu0 %1737
    %1739 = vrot.lane.b32.xlu0 %v434, 96
    %v1740 = vpop.permute.xlu0 %1739
    %1741 = vrot.lane.b32.xlu0 %v439, 96
    %v1742 = vpop.permute.xlu0 %1741
    %1743 = vrot.lane.b32.xlu0 %v442, 96
    %v1744 = vpop.permute.xlu0 %1743
    %1745 = vrot.lane.b32.xlu0 %v447, 96
    %v1746 = vpop.permute.xlu0 %1745
    %1747 = vrot.lane.b32.xlu0 %v450, 96
    %v1748 = vpop.permute.xlu0 %1747
    %v1781 = vmul.f32 %v1527, %v1686
    %v1782 = vmul.f32 %v1530, %v1688
    %v1783 = vmul.f32 %v1535, %v1690
    %v1784 = vmul.f32 %v1538, %v1692
    %v1785 = vmul.f32 %v1543, %v1694
    %v1786 = vmul.f32 %v1546, %v1696
    %v1787 = vmul.f32 %v1551, %v1698
    %v1788 = vmul.f32 %v1554, %v1700
    %v1789 = vmul.f32 %v1559, %v1702
    %v1790 = vmul.f32 %v1562, %v1704
    %v1791 = vmul.f32 %v1567, %v1706
    %v1792 = vmul.f32 %v1570, %v1708
    %v1793 = vmul.f32 %v1575, %v1710
    %v1794 = vmul.f32 %v1578, %v1712
    %v1795 = vmul.f32 %v1583, %v1714
    %v1796 = vmul.f32 %v1586, %v1716
    %v1797 = vmul.f32 %v1591, %v1718
    %v1798 = vmul.f32 %v1594, %v1720
    %v1799 = vmul.f32 %v1599, %v1722
    %v1800 = vmul.f32 %v1602, %v1724
    %v1801 = vmul.f32 %v1607, %v1726
    %v1802 = vmul.f32 %v1610, %v1728
    %v1803 = vmul.f32 %v1615, %v1730
    %v1804 = vmul.f32 %v1618, %v1732
    %v1805 = vmul.f32 %v1623, %v1734
    %v1806 = vmul.f32 %v1626, %v1736
    %v1807 = vmul.f32 %v1631, %v1738
    %v1808 = vmul.f32 %v1634, %v1740
    %v1809 = vmul.f32 %v1639, %v1742
    %v1810 = vmul.f32 %v1642, %v1744
    %v1811 = vmul.f32 %v1647, %v1746
    %v1812 = vmul.f32 %v1650, %v1748
    %v1813 = vsel %vm243, %v1781, 0.0
    %v1814 = vsel %vm243, %v1782, 0.0
    %v1815 = vadd.f32 %v1813, %v1814
    %v1816 = vrot.slane %v1815, 4
    %v1817 = vadd.f32 %v1815, %v1816
    %v1818 = vrot.slane %v1817, 2
    %v1819 = vadd.f32 %v1817, %v1818
    %v1820 = vrot.slane %v1819, 1
    %v1821 = vadd.f32 %v1819, %v1820
    %v1822 = vsel %vm243, %v1783, 0.0
    %v1823 = vsel %vm243, %v1784, 0.0
    %v1824 = vadd.f32 %v1822, %v1823
    %v1825 = vrot.slane %v1824, 4
    %v1826 = vadd.f32 %v1824, %v1825
    %v1827 = vrot.slane %v1826, 2
    %v1828 = vadd.f32 %v1826, %v1827
    %v1829 = vrot.slane %v1828, 1
    %v1830 = vadd.f32 %v1828, %v1829
    %v1831 = vsel %vm243, %v1785, 0.0
    %v1832 = vsel %vm243, %v1786, 0.0
    %v1833 = vadd.f32 %v1831, %v1832
    %v1834 = vrot.slane %v1833, 4
    %v1835 = vadd.f32 %v1833, %v1834
    %v1836 = vrot.slane %v1835, 2
    %v1837 = vadd.f32 %v1835, %v1836
    %v1838 = vrot.slane %v1837, 1
    %v1839 = vadd.f32 %v1837, %v1838
    %v1840 = vsel %vm243, %v1787, 0.0
    %v1841 = vsel %vm243, %v1788, 0.0
    %v1842 = vadd.f32 %v1840, %v1841
    %v1843 = vrot.slane %v1842, 4
    %v1844 = vadd.f32 %v1842, %v1843
    %v1845 = vrot.slane %v1844, 2
    %v1846 = vadd.f32 %v1844, %v1845
    %v1847 = vrot.slane %v1846, 1
    %v1848 = vadd.f32 %v1846, %v1847
    %v1849 = vsel %vm243, %v1789, 0.0
    %v1850 = vsel %vm243, %v1790, 0.0
    %v1851 = vadd.f32 %v1849, %v1850
    %v1852 = vrot.slane %v1851, 4
    %v1853 = vadd.f32 %v1851, %v1852
    %v1854 = vrot.slane %v1853, 2
    %v1855 = vadd.f32 %v1853, %v1854
    %v1856 = vrot.slane %v1855, 1
    %v1857 = vadd.f32 %v1855, %v1856
    %v1858 = vsel %vm243, %v1791, 0.0
    %v1859 = vsel %vm243, %v1792, 0.0
    %v1860 = vadd.f32 %v1858, %v1859
    %v1861 = vrot.slane %v1860, 4
    %v1862 = vadd.f32 %v1860, %v1861
    %v1863 = vrot.slane %v1862, 2
    %v1864 = vadd.f32 %v1862, %v1863
    %v1865 = vrot.slane %v1864, 1
    %v1866 = vadd.f32 %v1864, %v1865
    %v1867 = vsel %vm243, %v1793, 0.0
    %v1868 = vsel %vm243, %v1794, 0.0
    %v1869 = vadd.f32 %v1867, %v1868
    %v1870 = vrot.slane %v1869, 4
    %v1871 = vadd.f32 %v1869, %v1870
    %v1872 = vrot.slane %v1871, 2
    %v1873 = vadd.f32 %v1871, %v1872
    %v1874 = vrot.slane %v1873, 1
    %v1875 = vadd.f32 %v1873, %v1874
    %v1876 = vsel %vm243, %v1795, 0.0
    %v1877 = vsel %vm243, %v1796, 0.0
    %v1878 = vadd.f32 %v1876, %v1877
    %v1879 = vrot.slane %v1878, 4
    %v1880 = vadd.f32 %v1878, %v1879
    %v1881 = vrot.slane %v1880, 2
    %v1882 = vadd.f32 %v1880, %v1881
    %v1883 = vrot.slane %v1882, 1
    %v1884 = vadd.f32 %v1882, %v1883
    %v1885 = vsel %vm243, %v1797, 0.0
    %v1886 = vsel %vm243, %v1798, 0.0
    %v1887 = vadd.f32 %v1885, %v1886
    %v1888 = vrot.slane %v1887, 4
    %v1889 = vadd.f32 %v1887, %v1888
    %v1890 = vrot.slane %v1889, 2
    %v1891 = vadd.f32 %v1889, %v1890
    %v1892 = vrot.slane %v1891, 1
    %v1893 = vadd.f32 %v1891, %v1892
    %v1894 = vsel %vm243, %v1799, 0.0
    %v1895 = vsel %vm243, %v1800, 0.0
    %v1896 = vadd.f32 %v1894, %v1895
    %v1897 = vrot.slane %v1896, 4
    %v1898 = vadd.f32 %v1896, %v1897
    %v1899 = vrot.slane %v1898, 2
    %v1900 = vadd.f32 %v1898, %v1899
    %v1901 = vrot.slane %v1900, 1
    %v1902 = vadd.f32 %v1900, %v1901
    %v1903 = vsel %vm243, %v1801, 0.0
    %v1904 = vsel %vm243, %v1802, 0.0
    %v1905 = vadd.f32 %v1903, %v1904
    %v1906 = vrot.slane %v1905, 4
    %v1907 = vadd.f32 %v1905, %v1906
    %v1908 = vrot.slane %v1907, 2
    %v1909 = vadd.f32 %v1907, %v1908
    %v1910 = vrot.slane %v1909, 1
    %v1911 = vadd.f32 %v1909, %v1910
    %v1912 = vsel %vm243, %v1803, 0.0
    %v1913 = vsel %vm243, %v1804, 0.0
    %v1914 = vadd.f32 %v1912, %v1913
    %v1915 = vrot.slane %v1914, 4
    %v1916 = vadd.f32 %v1914, %v1915
    %v1917 = vrot.slane %v1916, 2
    %v1918 = vadd.f32 %v1916, %v1917
    %v1919 = vrot.slane %v1918, 1
    %v1920 = vadd.f32 %v1918, %v1919
    %v1921 = vsel %vm243, %v1805, 0.0
    %v1922 = vsel %vm243, %v1806, 0.0
    %v1923 = vadd.f32 %v1921, %v1922
    %v1924 = vrot.slane %v1923, 4
    %v1925 = vadd.f32 %v1923, %v1924
    %v1926 = vrot.slane %v1925, 2
    %v1927 = vadd.f32 %v1925, %v1926
    %v1928 = vrot.slane %v1927, 1
    %v1929 = vadd.f32 %v1927, %v1928
    %v1930 = vsel %vm243, %v1807, 0.0
    %v1931 = vsel %vm243, %v1808, 0.0
    %v1932 = vadd.f32 %v1930, %v1931
    %v1933 = vrot.slane %v1932, 4
    %v1934 = vadd.f32 %v1932, %v1933
    %v1935 = vrot.slane %v1934, 2
    %v1936 = vadd.f32 %v1934, %v1935
    %v1937 = vrot.slane %v1936, 1
    %v1938 = vadd.f32 %v1936, %v1937
    %v1939 = vsel %vm243, %v1809, 0.0
    %v1940 = vsel %vm243, %v1810, 0.0
    %v1941 = vadd.f32 %v1939, %v1940
    %v1942 = vrot.slane %v1941, 4
    %v1943 = vadd.f32 %v1941, %v1942
    %v1944 = vrot.slane %v1943, 2
    %v1945 = vadd.f32 %v1943, %v1944
    %v1946 = vrot.slane %v1945, 1
    %v1947 = vadd.f32 %v1945, %v1946
    %v1948 = vsel %vm243, %v1811, 0.0
    %v1949 = vsel %vm243, %v1812, 0.0
    %v1950 = vadd.f32 %v1948, %v1949
    %v1951 = vrot.slane %v1950, 4
    %v1952 = vadd.f32 %v1950, %v1951
    %v1953 = vrot.slane %v1952, 2
    %v1954 = vadd.f32 %v1952, %v1953
    %v1955 = vrot.slane %v1954, 1
    %v1956 = vadd.f32 %v1954, %v1955
    %v1957 = vpack.c.bf16 %v1279, %v1279
    %v1958 = vpack.c.bf16 %v1280, %v1280
    %v1959 = vpack.c.bf16 %v1281, %v1281
    %v1960 = vpack.c.bf16 %v1282, %v1282
    %v1961 = vpack.c.bf16 %v1283, %v1283
    %v1962 = vpack.c.bf16 %v1284, %v1284
    %v1963 = vpack.c.bf16 %v1285, %v1285
    %v1964 = vpack.c.bf16 %v1286, %v1286
    %v1965 = vpack.c.bf16 %v1287, %v1287
    %v1966 = vpack.c.bf16 %v1288, %v1288
    %v1967 = vpack.c.bf16 %v1289, %v1289
    %v1968 = vpack.c.bf16 %v1290, %v1290
    %v1969 = vpack.c.bf16 %v1291, %v1291
    %v1970 = vpack.c.bf16 %v1292, %v1292
    %v1971 = vpack.c.bf16 %v1293, %v1293
    %v1972 = vpack.c.bf16 %v1294, %v1294
    %v1989 = vunpack.c.l.b16 %v1957
    %v1990 = vunpack.c.l.b16 %v1958
    %v1991 = vunpack.c.l.b16 %v1959
    %v1992 = vunpack.c.l.b16 %v1960
    %v1993 = vunpack.c.l.b16 %v1961
    %v1994 = vunpack.c.l.b16 %v1962
    %v1995 = vunpack.c.l.b16 %v1963
    %v1996 = vunpack.c.l.b16 %v1964
    %v1997 = vunpack.c.l.b16 %v1965
    %v1998 = vunpack.c.l.b16 %v1966
    %v1999 = vunpack.c.l.b16 %v1967
    %v2000 = vunpack.c.l.b16 %v1968
    %v2001 = vunpack.c.l.b16 %v1969
    %v2002 = vunpack.c.l.b16 %v1970
    %v2003 = vunpack.c.l.b16 %v1971
    %v2004 = vunpack.c.l.b16 %v1972
    %v2005 = vrot.slane %v1990, 7
    %vm2006 = vcmask 1041409
    %v2007 = vsel %vm2006, %v2005, %v1989
    %v2008 = vrot.slane %v1991, 6
    %vm2009 = vcmask 1042434
    %v2010 = vsel %vm2009, %v2008, %v2007
    %v2011 = vrot.slane %v1992, 5
    %vm2012 = vcmask 1043459
    %v2013 = vsel %vm2012, %v2011, %v2010
    %v2014 = vrot.slane %v1993, 4
    %vm2015 = vcmask 1044484
    %v2016 = vsel %vm2015, %v2014, %v2013
    %v2017 = vrot.slane %v1994, 3
    %vm2018 = vcmask 1045509
    %v2019 = vsel %vm2018, %v2017, %v2016
    %v2020 = vrot.slane %v1995, 2
    %vm2021 = vcmask 1046534
    %v2022 = vsel %vm2021, %v2020, %v2019
    %v2023 = vrot.slane %v1996, 1
    %vm2024 = vcmask 1047559
    %v2025 = vsel %vm2024, %v2023, %v2022
    %v2026 = vrot.slane %v1998, 7
    %v2027 = vsel %vm2006, %v2026, %v1997
    %v2028 = vrot.slane %v1999, 6
    %v2029 = vsel %vm2009, %v2028, %v2027
    %v2030 = vrot.slane %v2000, 5
    %v2031 = vsel %vm2012, %v2030, %v2029
    %v2032 = vrot.slane %v2001, 4
    %v2033 = vsel %vm2015, %v2032, %v2031
    %v2034 = vrot.slane %v2002, 3
    %v2035 = vsel %vm2018, %v2034, %v2033
    %v2036 = vrot.slane %v2003, 2
    %v2037 = vsel %vm2021, %v2036, %v2035
    %v2038 = vrot.slane %v2004, 1
    %v2039 = vsel %vm2024, %v2038, %v2037
    %v2040 = vpack.c.b16 %v2039, %v2025
    %v2042 = vsel %vm734, %v2040, 0
    %2044 = vmatprep.subr.bf16.mxu0 0
    %2045 = vmatpush1.bf16.msra.mxu0 0
    %2046 = vmatprep.subr.bf16.mxu0 0
    %2047 = vmatpush1.bf16.msra.mxu0 0
    %2048 = vmatprep.subr.bf16.mxu0 0
    %2049 = vmatpush1.bf16.msra.mxu0 0
    %2050 = vmatprep.subr.bf16.mxu0 0
    %2051 = vmatpush1.bf16.msra.mxu0 0
    %2052 = vmatprep.subr.bf16.mxu0 0
    %2053 = vmatpush1.bf16.msra.mxu0 0
    %2054 = vmatprep.subr.bf16.mxu0 0
    %2055 = vmatpush1.bf16.msra.mxu0 0
    %2056 = vmatprep.subr.bf16.mxu0 0
    %2057 = vmatpush1.bf16.msra.mxu0 0
    %2058 = vmatprep.subr.bf16.mxu0 0
    %2059 = vmatpush1.bf16.msra.mxu0 %v1490
    %2060 = vmatprep.subr.bf16.mxu0 0
    %2061 = vmatpush2.bf16.msra.mxu0 0
    %2062 = vmatprep.subr.bf16.mxu0 0
    %2063 = vmatpush2.bf16.msra.mxu0 0
    %2064 = vmatprep.subr.bf16.mxu0 0
    %2065 = vmatpush2.bf16.msra.mxu0 0
    %2066 = vmatprep.subr.bf16.mxu0 0
    %2067 = vmatpush2.bf16.msra.mxu0 0
    %2068 = vmatprep.subr.bf16.mxu0 0
    %2069 = vmatpush2.bf16.msra.mxu0 0
    %2070 = vmatprep.subr.bf16.mxu0 0
    %2071 = vmatpush2.bf16.msra.mxu0 0
    %2072 = vmatprep.subr.bf16.mxu0 0
    %2073 = vmatpush2.bf16.msra.mxu0 0
    %2074 = vmatprep.subr.bf16.mxu0 0
    %2075 = vmatpush2.bf16.msra.mxu0 0
    %2076 = vmatprep.mubr.bf16.mxu0 0
    %2077 = vmatmul.mubr.bf16.gmra.mxu0 %v2042
    %v2078 = vpop.f32.mrf.mxu0
    %v2079 = vadd.f32 0.0, %v2078
    %v2080 = vpop.f32.mrf.mxu0
    %v2081 = vpop.f32.mrf.mxu0
    %v2082 = vadd.f32 0.0, %v2081
    %v2083 = vpop.f32.mrf.mxu0
    %2084 = vdwg.mxu0
    %v2085 = vld [vmem:[%s4] sm:$0x1]
    %v2087 = vlaneseq
    %v2088 = vshrl.u32 %v2087, 7
    %v2089 = vsub.s32 0, %v2088
    %v2090 = vrot.slane %v2085, %v2089
    %v2092 = vmul.f32 %v2079, %v2090
    %v2093 = vmul.f32 %v2082, %v2090
    %v2096 = vrot.slane %v2092, 1
    %v2097 = vrot.slane %v2092, 2
    %v2098 = vrot.slane %v2092, 3
    %v2099 = vrot.slane %v2092, 4
    %v2100 = vrot.slane %v2092, 5
    %v2101 = vrot.slane %v2092, 6
    %v2102 = vrot.slane %v2092, 7
    %v2103 = vrot.slane %v2093, 1
    %v2104 = vrot.slane %v2093, 2
    %v2105 = vrot.slane %v2093, 3
    %v2106 = vrot.slane %v2093, 4
    %v2107 = vrot.slane %v2093, 5
    %v2108 = vrot.slane %v2093, 6
    %v2109 = vrot.slane %v2093, 7
    %v2126 = vadd.f32 %v1821, %v2092
    %v2127 = vadd.f32 %v1830, %v2096
    %v2128 = vadd.f32 %v1839, %v2097
    %v2129 = vadd.f32 %v1848, %v2098
    %v2130 = vadd.f32 %v1857, %v2099
    %v2131 = vadd.f32 %v1866, %v2100
    %v2132 = vadd.f32 %v1875, %v2101
    %v2133 = vadd.f32 %v1884, %v2102
    %v2134 = vadd.f32 %v1893, %v2093
    %v2135 = vadd.f32 %v1902, %v2103
    %v2136 = vadd.f32 %v1911, %v2104
    %v2137 = vadd.f32 %v1920, %v2105
    %v2138 = vadd.f32 %v1929, %v2106
    %v2139 = vadd.f32 %v1938, %v2107
    %v2140 = vadd.f32 %v1947, %v2108
    %v2141 = vadd.f32 %v1956, %v2109
    %v2142 = vpack.c.bf16 %v2126, %v2126
    %v2143 = vpack.c.bf16 %v2127, %v2127
    %v2144 = vpack.c.bf16 %v2128, %v2128
    %v2145 = vpack.c.bf16 %v2129, %v2129
    %v2146 = vpack.c.bf16 %v2130, %v2130
    %v2147 = vpack.c.bf16 %v2131, %v2131
    %v2148 = vpack.c.bf16 %v2132, %v2132
    %v2149 = vpack.c.bf16 %v2133, %v2133
    %v2150 = vpack.c.bf16 %v2134, %v2134
    %v2151 = vpack.c.bf16 %v2135, %v2135
    %v2152 = vpack.c.bf16 %v2136, %v2136
    %v2153 = vpack.c.bf16 %v2137, %v2137
    %v2154 = vpack.c.bf16 %v2138, %v2138
    %v2155 = vpack.c.bf16 %v2139, %v2139
    %v2156 = vpack.c.bf16 %v2140, %v2140
    %v2157 = vpack.c.bf16 %v2141, %v2141
    %v2158 = vld [vmem:[%s9] sm:$0xf]
    %v2159 = vld [vmem:[%s9 + $0x4] sm:$0xf]
    %v2160 = vld [vmem:[%s9 + $0x8] sm:$0xf]
    %v2161 = vld [vmem:[%s9 + $0xc] sm:$0xf]
    %v2162 = vld [vmem:[%s10] sm:$0x1]
    %v2164 = vlaneseq
    %v2165 = vshrl.u32 %v2164, 7
    %v2166 = vsub.s32 0, %v2165
    %v2167 = vrot.slane %v2162, %v2166
    %v2185 = vunpack.c.l.b16 %v2142
    %v2186 = vunpack.c.l.b16 %v2143
    %v2187 = vunpack.c.l.b16 %v2144
    %v2188 = vunpack.c.l.b16 %v2145
    %v2189 = vunpack.c.l.b16 %v2146
    %v2190 = vunpack.c.l.b16 %v2147
    %v2191 = vunpack.c.l.b16 %v2148
    %v2192 = vunpack.c.l.b16 %v2149
    %v2193 = vunpack.c.l.b16 %v2150
    %v2194 = vunpack.c.l.b16 %v2151
    %v2195 = vunpack.c.l.b16 %v2152
    %v2196 = vunpack.c.l.b16 %v2153
    %v2197 = vunpack.c.l.b16 %v2154
    %v2198 = vunpack.c.l.b16 %v2155
    %v2199 = vunpack.c.l.b16 %v2156
    %v2200 = vunpack.c.l.b16 %v2157
    %v2201 = vrot.slane %v2186, 7
    %v2202 = vsel %vm2006, %v2201, %v2185
    %v2203 = vrot.slane %v2187, 6
    %v2204 = vsel %vm2009, %v2203, %v2202
    %v2205 = vrot.slane %v2188, 5
    %v2206 = vsel %vm2012, %v2205, %v2204
    %v2207 = vrot.slane %v2189, 4
    %v2208 = vsel %vm2015, %v2207, %v2206
    %v2209 = vrot.slane %v2190, 3
    %v2210 = vsel %vm2018, %v2209, %v2208
    %v2211 = vrot.slane %v2191, 2
    %v2212 = vsel %vm2021, %v2211, %v2210
    %v2213 = vrot.slane %v2192, 1
    %v2214 = vsel %vm2024, %v2213, %v2212
    %v2215 = vrot.slane %v2194, 7
    %v2216 = vsel %vm2006, %v2215, %v2193
    %v2217 = vrot.slane %v2195, 6
    %v2218 = vsel %vm2009, %v2217, %v2216
    %v2219 = vrot.slane %v2196, 5
    %v2220 = vsel %vm2012, %v2219, %v2218
    %v2221 = vrot.slane %v2197, 4
    %v2222 = vsel %vm2015, %v2221, %v2220
    %v2223 = vrot.slane %v2198, 3
    %v2224 = vsel %vm2018, %v2223, %v2222
    %v2225 = vrot.slane %v2199, 2
    %v2226 = vsel %vm2021, %v2225, %v2224
    %v2227 = vrot.slane %v2200, 1
    %v2228 = vsel %vm2024, %v2227, %v2226
    %v2229 = vpack.c.b16 %v2228, %v2214
    %v2234 = vunpack.c.l.b16 %v2158
    %v2235 = vunpack.c.l.b16 %v2159
    %v2236 = vunpack.c.l.b16 %v2160
    %v2237 = vunpack.c.l.b16 %v2161
    %v2238 = vpack.c.b16 %v2235, %v2234
    %v2239 = vpack.c.b16 %v2237, %v2236
    %v2243 = vsel %vm243, %v2229, 0
    %2245 = vmatprep.subr.bf16.mxu0 0
    %2246 = vmatpush1.bf16.msra.mxu0 0
    %2247 = vmatprep.subr.bf16.mxu0 0
    %2248 = vmatpush1.bf16.msra.mxu0 0
    %2249 = vmatprep.subr.bf16.mxu0 0
    %2250 = vmatpush1.bf16.msra.mxu0 0
    %2251 = vmatprep.subr.bf16.mxu0 0
    %2252 = vmatpush1.bf16.msra.mxu0 0
    %2253 = vmatprep.subr.bf16.mxu0 0
    %2254 = vmatpush1.bf16.msra.mxu0 0
    %2255 = vmatprep.subr.bf16.mxu0 0
    %2256 = vmatpush1.bf16.msra.mxu0 0
    %2257 = vmatprep.subr.bf16.mxu0 0
    %2258 = vmatpush1.bf16.msra.mxu0 %v2239
    %2259 = vmatprep.subr.bf16.mxu0 0
    %2260 = vmatpush1.bf16.msra.mxu0 %v2238
    %2261 = vmatprep.subr.bf16.mxu0 0
    %2262 = vmatpush2.bf16.msra.mxu0 0
    %2263 = vmatprep.subr.bf16.mxu0 0
    %2264 = vmatpush2.bf16.msra.mxu0 0
    %2265 = vmatprep.subr.bf16.mxu0 0
    %2266 = vmatpush2.bf16.msra.mxu0 0
    %2267 = vmatprep.subr.bf16.mxu0 0
    %2268 = vmatpush2.bf16.msra.mxu0 0
    %2269 = vmatprep.subr.bf16.mxu0 0
    %2270 = vmatpush2.bf16.msra.mxu0 0
    %2271 = vmatprep.subr.bf16.mxu0 0
    %2272 = vmatpush2.bf16.msra.mxu0 0
    %2273 = vmatprep.subr.bf16.mxu0 0
    %2274 = vmatpush2.bf16.msra.mxu0 0
    %2275 = vmatprep.subr.bf16.mxu0 0
    %2276 = vmatpush2.bf16.msra.mxu0 0
    %2277 = vmatprep.mubr.bf16.mxu0 0
    %2278 = vmatmul.mubr.bf16.gmra.mxu0 %v2243
    %v2279 = vpop.f32.mrf.mxu0
    %v2280 = vadd.f32 %v2167, %v2279
    %v2281 = vpop.f32.mrf.mxu0
    %v2282 = vpop.f32.mrf.mxu0
    %v2283 = vadd.f32 %v2167, %v2282
    %v2284 = vpop.f32.mrf.mxu0
    %2285 = vdwg.mxu0
    %v2286 = vpack.c.bf16 %v2283, %v2280
    %v2287 = vld [vmem:[%s11] sm:$0xf]
    %v2288 = vld [vmem:[%s11 + $0x4] sm:$0xf]
    %v2289 = vld [vmem:[%s11 + $0x8] sm:$0xf]
    %v2290 = vld [vmem:[%s11 + $0xc] sm:$0xf]
    %v2291 = vld [vmem:[%s12] sm:$0x1]
    %v2293 = vlaneseq
    %v2294 = vshrl.u32 %v2293, 7
    %v2295 = vsub.s32 0, %v2294
    %v2296 = vrot.slane %v2291, %v2295
    %v2302 = vunpack.c.l.b16 %v2287
    %v2303 = vunpack.c.l.b16 %v2288
    %v2304 = vunpack.c.l.b16 %v2289
    %v2305 = vunpack.c.l.b16 %v2290
    %v2306 = vpack.c.b16 %v2303, %v2302
    %v2307 = vpack.c.b16 %v2305, %v2304
    %v2311 = vsel %vm243, %v2286, 0
    %2313 = vmatprep.subr.bf16.mxu0 0
    %2314 = vmatpush1.bf16.msra.mxu0 0
    %2315 = vmatprep.subr.bf16.mxu0 0
    %2316 = vmatpush1.bf16.msra.mxu0 0
    %2317 = vmatprep.subr.bf16.mxu0 0
    %2318 = vmatpush1.bf16.msra.mxu0 0
    %2319 = vmatprep.subr.bf16.mxu0 0
    %2320 = vmatpush1.bf16.msra.mxu0 0
    %2321 = vmatprep.subr.bf16.mxu0 0
    %2322 = vmatpush1.bf16.msra.mxu0 0
    %2323 = vmatprep.subr.bf16.mxu0 0
    %2324 = vmatpush1.bf16.msra.mxu0 0
    %2325 = vmatprep.subr.bf16.mxu0 0
    %2326 = vmatpush1.bf16.msra.mxu0 %v2307
    %2327 = vmatprep.subr.bf16.mxu0 0
    %2328 = vmatpush1.bf16.msra.mxu0 %v2306
    %2329 = vmatprep.subr.bf16.mxu0 0
    %2330 = vmatpush2.bf16.msra.mxu0 0
    %2331 = vmatprep.subr.bf16.mxu0 0
    %2332 = vmatpush2.bf16.msra.mxu0 0
    %2333 = vmatprep.subr.bf16.mxu0 0
    %2334 = vmatpush2.bf16.msra.mxu0 0
    %2335 = vmatprep.subr.bf16.mxu0 0
    %2336 = vmatpush2.bf16.msra.mxu0 0
    %2337 = vmatprep.subr.bf16.mxu0 0
    %2338 = vmatpush2.bf16.msra.mxu0 0
    %2339 = vmatprep.subr.bf16.mxu0 0
    %2340 = vmatpush2.bf16.msra.mxu0 0
    %2341 = vmatprep.subr.bf16.mxu0 0
    %2342 = vmatpush2.bf16.msra.mxu0 0
    %2343 = vmatprep.subr.bf16.mxu0 0
    %2344 = vmatpush2.bf16.msra.mxu0 0
    %2345 = vmatprep.mubr.bf16.mxu0 0
    %2346 = vmatmul.mubr.bf16.gmra.mxu0 %v2311
    %v2347 = vpop.f32.mrf.mxu0
    %v2348 = vadd.f32 %v2296, %v2347
    %v2349 = vpop.f32.mrf.mxu0
    %v2350 = vpop.f32.mrf.mxu0
    %v2351 = vadd.f32 %v2296, %v2350
    %v2352 = vpop.f32.mrf.mxu0
    %2353 = vdwg.mxu0
    %v2354 = vsel %vm734, %v1391, 0.0
    %2355 = vadd.xlane.f32.xlu0 %v2354
    %v2356 = vpop.xlane.xlu0 %2355
    %v2357 = vsel %vm734, %v1392, 0.0
    %2358 = vadd.xlane.f32.xlu0 %v2357
    %v2359 = vpop.xlane.xlu0 %2358
    %v2360 = vsel %vm734, %v1393, 0.0
    %2361 = vadd.xlane.f32.xlu0 %v2360
    %v2362 = vpop.xlane.xlu0 %2361
    %v2363 = vsel %vm734, %v1394, 0.0
    %2364 = vadd.xlane.f32.xlu0 %v2363
    %v2365 = vpop.xlane.xlu0 %2364
    %v2366 = vsel %vm734, %v1395, 0.0
    %2367 = vadd.xlane.f32.xlu0 %v2366
    %v2368 = vpop.xlane.xlu0 %2367
    %v2369 = vsel %vm734, %v1396, 0.0
    %2370 = vadd.xlane.f32.xlu0 %v2369
    %v2371 = vpop.xlane.xlu0 %2370
    %v2372 = vsel %vm734, %v1397, 0.0
    %2373 = vadd.xlane.f32.xlu0 %v2372
    %v2374 = vpop.xlane.xlu0 %2373
    %v2375 = vsel %vm734, %v1398, 0.0
    %2376 = vadd.xlane.f32.xlu0 %v2375
    %v2377 = vpop.xlane.xlu0 %2376
    %v2378 = vsel %vm734, %v1399, 0.0
    %2379 = vadd.xlane.f32.xlu0 %v2378
    %v2380 = vpop.xlane.xlu0 %2379
    %v2381 = vsel %vm734, %v1400, 0.0
    %2382 = vadd.xlane.f32.xlu0 %v2381
    %v2383 = vpop.xlane.xlu0 %2382
    %v2384 = vsel %vm734, %v1401, 0.0
    %2385 = vadd.xlane.f32.xlu0 %v2384
    %v2386 = vpop.xlane.xlu0 %2385
    %v2387 = vsel %vm734, %v1402, 0.0
    %2388 = vadd.xlane.f32.xlu0 %v2387
    %v2389 = vpop.xlane.xlu0 %2388
    %v2390 = vsel %vm734, %v1403, 0.0
    %2391 = vadd.xlane.f32.xlu0 %v2390
    %v2392 = vpop.xlane.xlu0 %2391
    %v2393 = vsel %vm734, %v1404, 0.0
    %2394 = vadd.xlane.f32.xlu0 %v2393
    %v2395 = vpop.xlane.xlu0 %2394
    %v2396 = vsel %vm734, %v1405, 0.0
    %2397 = vadd.xlane.f32.xlu0 %v2396
    %v2398 = vpop.xlane.xlu0 %2397
    %v2399 = vsel %vm734, %v1406, 0.0
    %2400 = vadd.xlane.f32.xlu0 %v2399
    %v2401 = vpop.xlane.xlu0 %2400
    %v2402 = vsel %vm734, %v1407, 0.0
    %2403 = vadd.xlane.f32.xlu0 %v2402
    %v2404 = vpop.xlane.xlu0 %2403
    %v2405 = vsel %vm734, %v1408, 0.0
    %2406 = vadd.xlane.f32.xlu0 %v2405
    %v2407 = vpop.xlane.xlu0 %2406
    %v2408 = vsel %vm734, %v1409, 0.0
    %2409 = vadd.xlane.f32.xlu0 %v2408
    %v2410 = vpop.xlane.xlu0 %2409
    %v2411 = vsel %vm734, %v1410, 0.0
    %2412 = vadd.xlane.f32.xlu0 %v2411
    %v2413 = vpop.xlane.xlu0 %2412
    %v2414 = vsel %vm734, %v1411, 0.0
    %2415 = vadd.xlane.f32.xlu0 %v2414
    %v2416 = vpop.xlane.xlu0 %2415
    %v2417 = vsel %vm734, %v1412, 0.0
    %2418 = vadd.xlane.f32.xlu0 %v2417
    %v2419 = vpop.xlane.xlu0 %2418
    %v2420 = vsel %vm734, %v1413, 0.0
    %2421 = vadd.xlane.f32.xlu0 %v2420
    %v2422 = vpop.xlane.xlu0 %2421
    %v2423 = vsel %vm734, %v1414, 0.0
    %2424 = vadd.xlane.f32.xlu0 %v2423
    %v2425 = vpop.xlane.xlu0 %2424
    %v2426 = vsel %vm734, %v1415, 0.0
    %2427 = vadd.xlane.f32.xlu0 %v2426
    %v2428 = vpop.xlane.xlu0 %2427
    %v2429 = vsel %vm734, %v1416, 0.0
    %2430 = vadd.xlane.f32.xlu0 %v2429
    %v2431 = vpop.xlane.xlu0 %2430
    %v2432 = vsel %vm734, %v1417, 0.0
    %2433 = vadd.xlane.f32.xlu0 %v2432
    %v2434 = vpop.xlane.xlu0 %2433
    %v2435 = vsel %vm734, %v1418, 0.0
    %2436 = vadd.xlane.f32.xlu0 %v2435
    %v2437 = vpop.xlane.xlu0 %2436
    %v2438 = vsel %vm734, %v1419, 0.0
    %2439 = vadd.xlane.f32.xlu0 %v2438
    %v2440 = vpop.xlane.xlu0 %2439
    %v2441 = vsel %vm734, %v1420, 0.0
    %2442 = vadd.xlane.f32.xlu0 %v2441
    %v2443 = vpop.xlane.xlu0 %2442
    %v2444 = vsel %vm734, %v1421, 0.0
    %2445 = vadd.xlane.f32.xlu0 %v2444
    %v2446 = vpop.xlane.xlu0 %2445
    %v2447 = vsel %vm734, %v1422, 0.0
    %2448 = vadd.xlane.f32.xlu0 %v2447
    %v2449 = vpop.xlane.xlu0 %2448
    %v2450 = vrcp.pop 4.0
    %v2451 = vmul.f32 %v2356, %v2450
    %v2452 = vmul.f32 %v2359, %v2450
    %v2453 = vmul.f32 %v2362, %v2450
    %v2454 = vmul.f32 %v2365, %v2450
    %v2455 = vmul.f32 %v2368, %v2450
    %v2456 = vmul.f32 %v2371, %v2450
    %v2457 = vmul.f32 %v2374, %v2450
    %v2458 = vmul.f32 %v2377, %v2450
    %v2459 = vmul.f32 %v2380, %v2450
    %v2460 = vmul.f32 %v2383, %v2450
    %v2461 = vmul.f32 %v2386, %v2450
    %v2462 = vmul.f32 %v2389, %v2450
    %v2463 = vmul.f32 %v2392, %v2450
    %v2464 = vmul.f32 %v2395, %v2450
    %v2465 = vmul.f32 %v2398, %v2450
    %v2466 = vmul.f32 %v2401, %v2450
    %v2467 = vmul.f32 %v2404, %v2450
    %v2468 = vmul.f32 %v2407, %v2450
    %v2469 = vmul.f32 %v2410, %v2450
    %v2470 = vmul.f32 %v2413, %v2450
    %v2471 = vmul.f32 %v2416, %v2450
    %v2472 = vmul.f32 %v2419, %v2450
    %v2473 = vmul.f32 %v2422, %v2450
    %v2474 = vmul.f32 %v2425, %v2450
    %v2475 = vmul.f32 %v2428, %v2450
    %v2476 = vmul.f32 %v2431, %v2450
    %v2477 = vmul.f32 %v2434, %v2450
    %v2478 = vmul.f32 %v2437, %v2450
    %v2479 = vmul.f32 %v2440, %v2450
    %v2480 = vmul.f32 %v2443, %v2450
    %v2481 = vmul.f32 %v2446, %v2450
    %v2482 = vmul.f32 %v2449, %v2450
    %v2515 = vlaneseq
    %v2516 = vand.u32 %v2515, 127
    %v2517 = vadd.s32 %v2516, 4294967288
    %v2518 = vlaneseq
    %v2519 = vshrl.u32 %v2518, 7
    %v2520 = vsub.s32 %v2517, %v2519
    %v2521 = vrot.slane %v2451, %v2520
    %v2522 = vadd.s32 %v2516, 4294967280
    %v2523 = vlaneseq
    %v2524 = vshrl.u32 %v2523, 7
    %v2525 = vsub.s32 %v2522, %v2524
    %v2526 = vrot.slane %v2452, %v2525
    %vm2527 = vcmask 195712
    %v2528 = vsel %vm2527, %v2526, %v2521
    %v2529 = vlaneseq
    %v2530 = vshrl.u32 %v2529, 7
    %v2531 = vsub.s32 %v2517, %v2530
    %v2532 = vrot.slane %v2453, %v2531
    %v2533 = vlaneseq
    %v2534 = vshrl.u32 %v2533, 7
    %v2535 = vsub.s32 %v2522, %v2534
    %v2536 = vrot.slane %v2454, %v2535
    %v2537 = vsel %vm2527, %v2536, %v2532
    %v2538 = vlaneseq
    %v2539 = vshrl.u32 %v2538, 7
    %v2540 = vsub.s32 %v2517, %v2539
    %v2541 = vrot.slane %v2455, %v2540
    %v2542 = vlaneseq
    %v2543 = vshrl.u32 %v2542, 7
    %v2544 = vsub.s32 %v2522, %v2543
    %v2545 = vrot.slane %v2456, %v2544
    %v2546 = vsel %vm2527, %v2545, %v2541
    %v2547 = vlaneseq
    %v2548 = vshrl.u32 %v2547, 7
    %v2549 = vsub.s32 %v2517, %v2548
    %v2550 = vrot.slane %v2457, %v2549
    %v2551 = vlaneseq
    %v2552 = vshrl.u32 %v2551, 7
    %v2553 = vsub.s32 %v2522, %v2552
    %v2554 = vrot.slane %v2458, %v2553
    %v2555 = vsel %vm2527, %v2554, %v2550
    %v2556 = vlaneseq
    %v2557 = vshrl.u32 %v2556, 7
    %v2558 = vsub.s32 %v2517, %v2557
    %v2559 = vrot.slane %v2459, %v2558
    %v2560 = vlaneseq
    %v2561 = vshrl.u32 %v2560, 7
    %v2562 = vsub.s32 %v2522, %v2561
    %v2563 = vrot.slane %v2460, %v2562
    %v2564 = vsel %vm2527, %v2563, %v2559
    %v2565 = vlaneseq
    %v2566 = vshrl.u32 %v2565, 7
    %v2567 = vsub.s32 %v2517, %v2566
    %v2568 = vrot.slane %v2461, %v2567
    %v2569 = vlaneseq
    %v2570 = vshrl.u32 %v2569, 7
    %v2571 = vsub.s32 %v2522, %v2570
    %v2572 = vrot.slane %v2462, %v2571
    %v2573 = vsel %vm2527, %v2572, %v2568
    %v2574 = vlaneseq
    %v2575 = vshrl.u32 %v2574, 7
    %v2576 = vsub.s32 %v2517, %v2575
    %v2577 = vrot.slane %v2463, %v2576
    %v2578 = vlaneseq
    %v2579 = vshrl.u32 %v2578, 7
    %v2580 = vsub.s32 %v2522, %v2579
    %v2581 = vrot.slane %v2464, %v2580
    %v2582 = vsel %vm2527, %v2581, %v2577
    %v2583 = vlaneseq
    %v2584 = vshrl.u32 %v2583, 7
    %v2585 = vsub.s32 %v2517, %v2584
    %v2586 = vrot.slane %v2465, %v2585
    %v2587 = vlaneseq
    %v2588 = vshrl.u32 %v2587, 7
    %v2589 = vsub.s32 %v2522, %v2588
    %v2590 = vrot.slane %v2466, %v2589
    %v2591 = vsel %vm2527, %v2590, %v2586
    %v2592 = vlaneseq
    %v2593 = vshrl.u32 %v2592, 7
    %v2594 = vsub.s32 %v2517, %v2593
    %v2595 = vrot.slane %v2467, %v2594
    %v2596 = vlaneseq
    %v2597 = vshrl.u32 %v2596, 7
    %v2598 = vsub.s32 %v2522, %v2597
    %v2599 = vrot.slane %v2468, %v2598
    %v2600 = vsel %vm2527, %v2599, %v2595
    %v2601 = vlaneseq
    %v2602 = vshrl.u32 %v2601, 7
    %v2603 = vsub.s32 %v2517, %v2602
    %v2604 = vrot.slane %v2469, %v2603
    %v2605 = vlaneseq
    %v2606 = vshrl.u32 %v2605, 7
    %v2607 = vsub.s32 %v2522, %v2606
    %v2608 = vrot.slane %v2470, %v2607
    %v2609 = vsel %vm2527, %v2608, %v2604
    %v2610 = vlaneseq
    %v2611 = vshrl.u32 %v2610, 7
    %v2612 = vsub.s32 %v2517, %v2611
    %v2613 = vrot.slane %v2471, %v2612
    %v2614 = vlaneseq
    %v2615 = vshrl.u32 %v2614, 7
    %v2616 = vsub.s32 %v2522, %v2615
    %v2617 = vrot.slane %v2472, %v2616
    %v2618 = vsel %vm2527, %v2617, %v2613
    %v2619 = vlaneseq
    %v2620 = vshrl.u32 %v2619, 7
    %v2621 = vsub.s32 %v2517, %v2620
    %v2622 = vrot.slane %v2473, %v2621
    %v2623 = vlaneseq
    %v2624 = vshrl.u32 %v2623, 7
    %v2625 = vsub.s32 %v2522, %v2624
    %v2626 = vrot.slane %v2474, %v2625
    %v2627 = vsel %vm2527, %v2626, %v2622
    %v2628 = vlaneseq
    %v2629 = vshrl.u32 %v2628, 7
    %v2630 = vsub.s32 %v2517, %v2629
    %v2631 = vrot.slane %v2475, %v2630
    %v2632 = vlaneseq
    %v2633 = vshrl.u32 %v2632, 7
    %v2634 = vsub.s32 %v2522, %v2633
    %v2635 = vrot.slane %v2476, %v2634
    %v2636 = vsel %vm2527, %v2635, %v2631
    %v2637 = vlaneseq
    %v2638 = vshrl.u32 %v2637, 7
    %v2639 = vsub.s32 %v2517, %v2638
    %v2640 = vrot.slane %v2477, %v2639
    %v2641 = vlaneseq
    %v2642 = vshrl.u32 %v2641, 7
    %v2643 = vsub.s32 %v2522, %v2642
    %v2644 = vrot.slane %v2478, %v2643
    %v2645 = vsel %vm2527, %v2644, %v2640
    %v2646 = vlaneseq
    %v2647 = vshrl.u32 %v2646, 7
    %v2648 = vsub.s32 %v2517, %v2647
    %v2649 = vrot.slane %v2479, %v2648
    %v2650 = vlaneseq
    %v2651 = vshrl.u32 %v2650, 7
    %v2652 = vsub.s32 %v2522, %v2651
    %v2653 = vrot.slane %v2480, %v2652
    %v2654 = vsel %vm2527, %v2653, %v2649
    %v2655 = vlaneseq
    %v2656 = vshrl.u32 %v2655, 7
    %v2657 = vsub.s32 %v2517, %v2656
    %v2658 = vrot.slane %v2481, %v2657
    %v2659 = vlaneseq
    %v2660 = vshrl.u32 %v2659, 7
    %v2661 = vsub.s32 %v2522, %v2660
    %v2662 = vrot.slane %v2482, %v2661
    %v2663 = vsel %vm2527, %v2662, %v2658
    %v2664 = vsel %vm2006, %v2537, %v2528
    %v2665 = vsel %vm2009, %v2546, %v2664
    %v2666 = vsel %vm2012, %v2555, %v2665
    %v2667 = vsel %vm2015, %v2564, %v2666
    %v2668 = vsel %vm2018, %v2573, %v2667
    %v2669 = vsel %vm2021, %v2582, %v2668
    %v2670 = vsel %vm2024, %v2591, %v2669
    %v2671 = vsel %vm2006, %v2609, %v2600
    %v2672 = vsel %vm2009, %v2618, %v2671
    %v2673 = vsel %vm2012, %v2627, %v2672
    %v2674 = vsel %vm2015, %v2636, %v2673
    %v2675 = vsel %vm2018, %v2645, %v2674
    %v2676 = vsel %vm2021, %v2654, %v2675
    %v2677 = vsel %vm2024, %v2663, %v2676
    %vm2680 = vcmask 64512
    %v2681 = vsel %vm2680, %v2348, %v2670
    %v2682 = vsel %vm2680, %v2351, %v2677
    %vm2683 = vcmask 195584
    %v2684 = vsel %vm2683, %v2681, 0.0
    %v2685 = vsel %vm2683, %v2682, 0.0
    %2686 = vst [vmem:[#allocation7] sm:$0xff] %v2684
    %2687 = vst [vmem:[#allocation7 + $0x8] sm:$0xff] %v2685
    // Predicated region
    $region62: #{tpu_custom_call.1} parent=1 // pred_check
      _
    $region63: #{tpu_custom_call.1} parent=1 // pred_check_branch
      %2689 = sbr.rel (0) target = $region65
    $region64: #{tpu_custom_call.1} parent=1 // pred_region
      %s2691 = ssub.s32 256, 256
      %2692 = vsyncadd [#allocation4], %s2691
      %s2693 = sshll.u32 [#allocation7], 4
      %s2694 = int_to_ptr.vmem [resolvable:$true] %s2693
      %2699 = dma.vmem_to_hbm [thread:$0]  %s2694, 256, %s13, [#allocation4], 128, 128, 8
    $region65: #{tpu_custom_call.1} parent=1 // pred_fallthru
      _
    // Predicated region
    $region66: #{tpu_custom_call.1} parent=1 // pred_check
      _
    $region67: #{tpu_custom_call.1} parent=1 // pred_check_branch
      %2701 = sbr.rel (0) target = $region69
    $region68: #{tpu_custom_call.1} parent=1 // pred_region
      %2702 = dma.done [#allocation4], 256
    $region69: #{tpu_custom_call.1} parent=1 // pred_fallthru
      _
    %2703 = vsyncpa [#allocation3], 1
    %2704 = vsyncpa [#allocation6], 1
    %2705 = vsyncpa [#allocation4], 1

</llo_original>
